<compile_context>
chip_gen: v7x
topology: tpu7x:2x2x1
jax: 0.10.0
libtpu: 0.0.40
codegen_flags: <defaults>
</compile_context>

<pallas_src>
import functools

import jax
import jax.numpy as jnp
from jax import lax
from jax.experimental import pallas as pl
from jax.experimental.pallas import tpu as pltpu


# ----------------------------------------------------------------------------
# Kernel: one (batch, row-strip) block of Conv3x3 + bias + scalar PReLU,
#         full Cout per step, output channels pre-arranged for PixelShuffle.
# ----------------------------------------------------------------------------
def _upsample_kernel(alpha_ref, x_ref, w_ref, b_ref, o_ref, acc_ref, *, MC):
    # alpha_ref : SMEM (1,)        f32   scalar PReLU slope
    # x_ref     : VMEM (M, K9)     bf16  im2col'ed input rows (M = TH*W, K9 = 9*Cin)
    # w_ref     : VMEM (K9, Cout)  bf16  full weight, output channels pre-permuted
    # b_ref     : VMEM (1, Cout)   f32   bias (permuted to match)
    # o_ref     : VMEM (M, Cout)   bf16  conv + PReLU output
    # acc_ref   : VMEM (M, Cout)   f32   scratch (keeps the matmul result out of vregs)
    M = o_ref.shape[0]

    # Single MXU matmul; K accumulated inside the MXU, result streamed to VMEM.
    acc_ref[...] = jnp.dot(x_ref[...], w_ref[...],
                           preferred_element_type=jnp.float32)

    a = alpha_ref[0]                 # scalar alpha from SMEM
    bias = b_ref[...]                # (1, Cout) f32
    # Bias + PReLU + bf16 cast in bounded row chunks (static loop).
    for i in range(M // MC):
        y = acc_ref[i * MC:(i + 1) * MC, :] + bias
        y = jnp.where(y > 0.0, y, a * y)
        o_ref[i * MC:(i + 1) * MC, :] = y.astype(o_ref.dtype)


def _pick_row_strip(N, H, W, K9, Cout):
    """Largest TH dividing H with modest VMEM blocks; keep >=2 grid steps (v7x)."""
    def ok(th):
        if H % th:
            return False
        if th != H and (th * W) % 8 != 0:
            return False
        x_bytes = th * W * K9 * 2        # bf16 x block
        acc_bytes = th * W * Cout * 4    # f32 scratch accumulator
        return x_bytes <= (2 << 20) and acc_bytes <= (4 << 20)

    th = max((t for t in range(1, H + 1) if ok(t)), default=H)
    if N * (H // th) < 2:                # give both v7x TensorCores work
        smaller = [t for t in range(1, th) if ok(t) and (H // t) >= 2]
        if smaller:
            th = max(smaller)
    return th


# ----------------------------------------------------------------------------
# Wrapper: parameter re-layout + pallas_call.  Matches nn.Upsample.forward.
# ----------------------------------------------------------------------------
def upsample_pallas(x_nchw, w_oihw, bias, alpha, r):
    """x: (N, Cin, H, W) f32.  w: (Cin*r^2, Cin, 3, 3) PyTorch OIHW.  bias: (Cin*r^2,)."""
    N, Cin, H, W = x_nchw.shape
    KH = KW = 3
    Cout = Cin * r * r
    Co = Cin                         # channels after PixelShuffle
    K9 = KH * KW * Cin
    assert w_oihw.shape == (Cout, Cin, KH, KW)

    # ---- weights: OIHW -> HWIO, output channels permuted from PyTorch
    #      PixelShuffle order (c*r^2 + i*r + j) to (i*r + j)*Co + c, flattened
    #      to (9*Cin, Cout) in the same (kh, kw, ci) order as the im2col input.
    w_hwio = jnp.transpose(w_oihw.astype(jnp.float32), (2, 3, 1, 0))        # (KH,KW,Cin,Cout)
    w_hwio = w_hwio.reshape(KH, KW, Cin, Co, r, r)                          # (..., c, i, j)
    w_hwio = jnp.transpose(w_hwio, (0, 1, 2, 4, 5, 3)).reshape(KH, KW, Cin, Cout)
    wk = w_hwio.reshape(K9, Cout).astype(jnp.bfloat16)                      # (9*Cin, Cout)
    b_r = jnp.transpose(bias.astype(jnp.float32).reshape(Co, r, r),
                        (1, 2, 0)).reshape(1, Cout)                         # (1, Cout) f32
    alpha_arr = jnp.asarray(alpha, jnp.float32).reshape(1)

    # ---- activations: NCHW -> NHWC bf16, pad by 1, full 3x3 im2col in HBM so
    #      the kernel is a plain 2-D matmul per row strip (no in-kernel slices).
    x = jnp.transpose(x_nchw, (0, 2, 3, 1)).astype(jnp.bfloat16)            # (N,H,W,Cin)
    xp = jnp.pad(x, ((0, 0), (1, 1), (1, 1), (0, 0)))                       # (N,H+2,W+2,Cin)
    xk = jnp.concatenate([xp[:, kh:kh + H, kw:kw + W, :]
                          for kh in range(KH) for kw in range(KW)],
                         axis=-1)                                           # (N,H,W,9*Cin)
    xk = xk.reshape(N, H * W, K9)

    TH = _pick_row_strip(N, H, W, K9, Cout)      # test shape: TH = H = 16
    M = TH * W                                   # 256 -> full MXU M on v6e/v7x
    MC = M if M <= 128 else next((mc for mc in range(128, 0, -8) if M % mc == 0), M)

    kernel = functools.partial(_upsample_kernel, MC=MC)

    out = pl.pallas_call(
        kernel,
        out_shape=jax.ShapeDtypeStruct((N, H * W, Cout), jnp.bfloat16),
        grid=(N, H // TH),
        in_specs=[
            pl.BlockSpec(memory_space=pltpu.MemorySpace.SMEM),          # alpha (scalar)
            pl.BlockSpec((None, M, K9), lambda n, h: (n, h, 0)),        # x row strip
            pl.BlockSpec((K9, Cout),    lambda n, h: (0, 0)),           # weights (resident)
            pl.BlockSpec((1, Cout),     lambda n, h: (0, 0)),           # bias (resident)
        ],
        out_specs=pl.BlockSpec((None, M, Cout), lambda n, h: (n, h, 0)),
        scratch_shapes=[pltpu.VMEM((M, Cout), jnp.float32)],
        compiler_params=pltpu.CompilerParams(
            dimension_semantics=("parallel", "parallel")),
    )(alpha_arr, xk, wk, b_r)

    # out[n, h*W + w, (i*r + j)*Co + c] == PReLU(conv)[n, h, w, pytorch_chan(c,i,j)]
    # so PixelShuffle + NHWC->NCHW + f32 cast is one fused transpose pass.
    out6 = out.reshape(N, H, W, r, r, Co)                       # (n, h, w, i, j, c)
    out_nchw = jnp.transpose(out6, (0, 5, 1, 3, 2, 4))          # (n, c, h, i, w, j)
    out_nchw = out_nchw.reshape(N, Co, H * r, W * r)
    return out_nchw.astype(jnp.float32)


# ----------------------------------------------------------------------------
# Pure-JAX reference (mirrors the PyTorch module op-for-op, f32 throughout)
# ----------------------------------------------------------------------------
def upsample_ref(x_nchw, w_oihw, bias, alpha, r):
    y = lax.conv_general_dilated(
        x_nchw.astype(jnp.float32), w_oihw.astype(jnp.float32),
        window_strides=(1, 1), padding=[(1, 1), (1, 1)],
        dimension_numbers=('NCHW', 'OIHW', 'NCHW'),
        precision=lax.Precision.HIGHEST)
    y = y + bias.reshape(1, -1, 1, 1)
    N, C, H, W = y.shape
    Co = C // (r * r)
    # nn.PixelShuffle: out[n, c, h*r+i, w*r+j] = y[n, c*r*r + i*r + j, h, w]
    y = y.reshape(N, Co, r, r, H, W).transpose(0, 1, 4, 2, 5, 3).reshape(N, Co, H * r, W * r)
    return jnp.where(y > 0, y, alpha * y)     # scalar PReLU


if __name__ == "__main__":
    key = jax.random.PRNGKey(0)
    k1, k2, k3 = jax.random.split(key, 3)

    # SRGAN Upsample config: in_channels=64, scale_resize=2
    N, Cin, H, W, r = 2, 64, 16, 16, 2
    Cout = Cin * r * r

    x = jax.random.normal(k1, (N, Cin, H, W), jnp.float32)
    w = 0.05 * jax.random.normal(k2, (Cout, Cin, 3, 3), jnp.float32)   # PyTorch OIHW
    b = 0.02 * jax.random.normal(k3, (Cout,), jnp.float32)
    alpha = jnp.float32(0.25)                                          # nn.PReLU default init

    out = jax.jit(upsample_pallas, static_argnums=(4,))(x, w, b, alpha, r)
    out = jax.block_until_ready(out)

    assert out.shape == (N, Cin, H * r, W * r), out.shape
    assert bool(jnp.all(jnp.isfinite(out)))

    ref = upsample_ref(x, w, b, alpha, r)
    err = float(jnp.max(jnp.abs(out - ref)))
    # bf16 MXU operands + bf16 kernel output (f32 accumulation): loosened tolerance.
    assert err < 1e-1, f"max abs error vs reference: {err}"

    print("KERNEL_OK")
</pallas_src>

<mosaic_0001>
module attributes {stable_mosaic.version = 11 : i64} {
  func.func @_upsample_kernel(%arg0: i32, %arg1: i32, %arg2: memref<1xf32, #tpu.memory_space<smem>>, %arg3: memref<1x256x576xbf16, #tpu.memory_space<vmem>>, %arg4: memref<576x256xbf16, #tpu.memory_space<vmem>>, %arg5: memref<1x256xf32, #tpu.memory_space<vmem>>, %arg6: memref<1x256x256xbf16, #tpu.memory_space<vmem>>, %arg7: memref<256x256xf32, #tpu.memory_space<vmem>>) attributes {dimension_semantics = [#tpu.dimension_semantics<parallel>, #tpu.dimension_semantics<parallel>], iteration_bounds = array<i64: 2, 1>, scalar_prefetch = 0 : i64, scratch_operands = 1 : i64, tpu.core_type = #tpu.core_type<tc>, window_params = [{transform_indices = @transform_0, window_bounds = array<i64: 1>}, {transform_indices = @transform_1, window_bounds = array<i64: 1, 256, 576>}, {pipeline_mode = #tpu.pipeline_mode<synchronous>, transform_indices = @transform_2, window_bounds = array<i64: 576, 256>}, {pipeline_mode = #tpu.pipeline_mode<synchronous>, transform_indices = @transform_3, window_bounds = array<i64: 1, 256>}, {transform_indices = @transform_4, window_bounds = array<i64: 1, 256, 256>}]} {
    %c0 = arith.constant 0 : index
    %c0_0 = arith.constant 0 : index
    %c0_1 = arith.constant 0 : index
    %0 = vector.load %arg3[%c0, %c0_0, %c0_1] : memref<1x256x576xbf16, #tpu.memory_space<vmem>>, vector<1x256x576xbf16>
    %1 = vector.shape_cast %0 : vector<1x256x576xbf16> to vector<256x576xbf16>
    %c0_2 = arith.constant 0 : index
    %c0_3 = arith.constant 0 : index
    %2 = vector.load %arg4[%c0_2, %c0_3] : memref<576x256xbf16, #tpu.memory_space<vmem>>, vector<576x256xbf16>
    %cst = arith.constant dense<0.000000e+00> : vector<256x256xf32>
    %3 = tpu.matmul %1, %2, %cst {dimension_numbers = #tpu.dot_dimension_numbers<[1], [0], [0], [1], [0, 0, 1, 1], [], []>} : vector<256x576xbf16>, vector<576x256xbf16>, vector<256x256xf32> -> vector<256x256xf32>
    %c0_4 = arith.constant 0 : index
    %c0_5 = arith.constant 0 : index
    %4 = vector.load %arg7[%c0_4, %c0_5] : memref<256x256xf32, #tpu.memory_space<vmem>>, vector<256x256xf32>
    tpu.vector_store %arg7[%c0_4, %c0_5], %3 {strides = array<i32>} : memref<256x256xf32, #tpu.memory_space<vmem>>, vector<256x256xf32>,
    %c0_6 = arith.constant 0 : index
    %5 = memref.load %arg2[%c0_6] : memref<1xf32, #tpu.memory_space<smem>>
    %c0_7 = arith.constant 0 : index
    %c0_8 = arith.constant 0 : index
    %6 = vector.load %arg5[%c0_7, %c0_8] : memref<1x256xf32, #tpu.memory_space<vmem>>, vector<1x256xf32>
    %c0_9 = arith.constant 0 : index
    %c0_10 = arith.constant 0 : index
    %7 = vector.load %arg7[%c0_9, %c0_10] : memref<256x256xf32, #tpu.memory_space<vmem>>, vector<128x256xf32>
    %8 = vector.broadcast %6 : vector<1x256xf32> to vector<128x256xf32>
    %9 = arith.addf %7, %8 : vector<128x256xf32>
    %cst_11 = arith.constant 0.000000e+00 : f32
    %10 = vector.broadcast %cst_11 : f32 to vector<128x256xf32>
    %11 = arith.cmpf ogt, %9, %10 : vector<128x256xf32>
    %12 = vector.broadcast %5 : f32 to vector<128x256xf32>
    %13 = arith.mulf %12, %9 : vector<128x256xf32>
    %14 = arith.select %11, %9, %13 : vector<128x256xi1>, vector<128x256xf32>
    %15 = arith.truncf %14 : vector<128x256xf32> to vector<128x256xbf16>
    %c0_12 = arith.constant 0 : index
    %c0_13 = arith.constant 0 : index
    %c0_14 = arith.constant 0 : index
    %16 = vector.load %arg6[%c0_12, %c0_13, %c0_14] : memref<1x256x256xbf16, #tpu.memory_space<vmem>>, vector<1x128x256xbf16>
    %17 = vector.shape_cast %16 : vector<1x128x256xbf16> to vector<128x256xbf16>
    %18 = vector.shape_cast %15 : vector<128x256xbf16> to vector<1x128x256xbf16>
    tpu.vector_store %arg6[%c0_12, %c0_13, %c0_14], %18 {strides = array<i32>} : memref<1x256x256xbf16, #tpu.memory_space<vmem>>, vector<1x128x256xbf16>,
    %c128 = arith.constant 128 : index
    %c0_15 = arith.constant 0 : index
    %19 = vector.load %arg7[%c128, %c0_15] : memref<256x256xf32, #tpu.memory_space<vmem>>, vector<128x256xf32>
    %20 = vector.broadcast %6 : vector<1x256xf32> to vector<128x256xf32>
    %21 = arith.addf %19, %20 : vector<128x256xf32>
    %cst_16 = arith.constant 0.000000e+00 : f32
    %22 = vector.broadcast %cst_16 : f32 to vector<128x256xf32>
    %23 = arith.cmpf ogt, %21, %22 : vector<128x256xf32>
    %24 = vector.broadcast %5 : f32 to vector<128x256xf32>
    %25 = arith.mulf %24, %21 : vector<128x256xf32>
    %26 = arith.select %23, %21, %25 : vector<128x256xi1>, vector<128x256xf32>
    %27 = arith.truncf %26 : vector<128x256xf32> to vector<128x256xbf16>
    %c0_17 = arith.constant 0 : index
    %c128_18 = arith.constant 128 : index
    %c0_19 = arith.constant 0 : index
    %28 = vector.load %arg6[%c0_17, %c128_18, %c0_19] : memref<1x256x256xbf16, #tpu.memory_space<vmem>>, vector<1x128x256xbf16>
    %29 = vector.shape_cast %28 : vector<1x128x256xbf16> to vector<128x256xbf16>
    %30 = vector.shape_cast %27 : vector<128x256xbf16> to vector<1x128x256xbf16>
    tpu.vector_store %arg6[%c0_17, %c128_18, %c0_19], %30 {strides = array<i32>} : memref<1x256x256xbf16, #tpu.memory_space<vmem>>, vector<1x128x256xbf16>,
    return
  }
  func.func @transform_0(%arg0: i32, %arg1: i32) -> i32 {
    %c0_i32 = arith.constant 0 : i32
    %c0_i32_0 = arith.constant 0 : i32
    return %c0_i32 : i32
  }
  func.func @transform_1(%arg0: i32, %arg1: i32) -> (i32, i32, i32) {
    %c0_i32 = arith.constant 0 : i32
    %c0_i32_0 = arith.constant 0 : i32
    return %arg0, %arg1, %c0_i32 : i32, i32, i32
  }
  func.func @transform_2(%arg0: i32, %arg1: i32) -> (i32, i32) {
    %c0_i32 = arith.constant 0 : i32
    %c0_i32_0 = arith.constant 0 : i32
    %c0_i32_1 = arith.constant 0 : i32
    return %c0_i32, %c0_i32_0 : i32, i32
  }
  func.func @transform_3(%arg0: i32, %arg1: i32) -> (i32, i32) {
    %c0_i32 = arith.constant 0 : i32
    %c0_i32_0 = arith.constant 0 : i32
    %c0_i32_1 = arith.constant 0 : i32
    return %c0_i32, %c0_i32_0 : i32, i32
  }
  func.func @transform_4(%arg0: i32, %arg1: i32) -> (i32, i32, i32) {
    %c0_i32 = arith.constant 0 : i32
    %c0_i32_0 = arith.constant 0 : i32
    return %arg0, %arg1, %c0_i32 : i32, i32, i32
  }
}

</mosaic_0001>

<llo_original>
// kernel: upsample_pallas.1
$region0: #{upsample_pallas.1}
  #allocation0 [shape = 'u32[]', space=smem, size = 0x4, offset = 0x4, fixed_abs, tag = 'smem constant byte address 0x4 - core index']
  #allocation1 [shape = 'u32[144,128]{1,0:T(1,128)}', space=vmem, size = 0x12000, scoped, tag = 'internal scratch']
  #allocation2 [shape = 'f32[256,256]{1,0:T(8,128)}', space=vmem, size = 0x40000, scoped, tag = 'scratch operand']
  #allocation3 [shape = 'f32[1]{0:T(128)S(6)}', space=smem, size = 0x200, scoped, tag = 'scoped memory for upsample_pallas.1']
  %s0 = inlined_call_operand.<no memory space> [shape: f32[1], index: 0, kind: input, shape index: {}]
  %s1 = inlined_call_operand.vmem [shape: bf16[2,256,576], index: 1, kind: input, shape index: {}]
  %s2 = inlined_call_operand.vmem [shape: bf16[576,256], index: 2, kind: input, shape index: {}]
  %s3 = inlined_call_operand.vmem [shape: f32[1,256], index: 3, kind: input, shape index: {}]
  %s4 = inlined_call_operand.vmem [shape: bf16[2,256,256], index: 4, kind: output, shape index: {}]
  %s5 = sld [smem:[#allocation0]]
  $region49: #{upsample_pallas.1} parent=0
    _
  %s7 = ssub.s32 1, %s5
  %s8 = scalar_select 0, %s7, %s5
  %9 = sst [smem:[#allocation3]] %s0
  loop: start=0, step=1, limit=4
  $region2: #{upsample_pallas.1} parent=0 // loop_pre_header
    _
  $region3: #{upsample_pallas.1} parent=0 // loop_header
    %s11 = sphi 0, %s15
    %p12 = scmp.ge.s32.totalorder %s11, 4
    %s18 = sphi 0, %s30
    %s19 = sphi 0, %s26
    %s20 = sphi 0, %s18
    %s21 = sphi 0, %s19
    %s22 = sphi 0, %s20
    %s23 = sphi 0, %s21
    %s31 = sphi 0, %s31
    %s33 = sphi 0, %s31
    %s34 = sphi 0, %s33
    %s48 = sphi 0, %s34
    %s56 = sphi 0, %s58
    %s59 = sphi 0, %s56
    %s60 = sphi 0, %s59
    %s76 = sphi 0, %s60
    %s80 = sphi 0, %s80
    %s82 = sphi 0, %s80
    %s83 = sphi 0, %s82
    %s97 = sphi 0, %s83
    %s101 = sphi 0, %s101
    %s103 = sphi 0, %s101
    %s104 = sphi 0, %s103
    %s118 = sphi 0, %s104
    %s126 = sphi 0, %s128
    %s129 = sphi 0, %s126
    %s130 = sphi 0, %s129
    %s146 = sphi 0, %s130
  $region4: #{upsample_pallas.1} parent=0 // loop_header_branch
    %14 = sbr.rel (%p12) target = $region8
  $region5: #{upsample_pallas.1} parent=0 // loop_body
    %s16 = ssub.s32 %s11, 1
    %s17 = ssub.s32 %s11, 2
    %s24 = sadd.s32 1, %s19
    %p25 = scmp.ge.s32.totalorder %s24, 1
    %s26 = scalar_select %p25, 0, %s24
    %s27 = sadd.s32 1, %s18
    %s28 = scalar_select %p25, %s27, %s18
    %p29 = scmp.ge.s32.totalorder %s28, 2
    %s30 = scalar_select %p29, 0, %s28
    %s32 = sadd.s32 %s31, 1
    %p35 = scmp.eq.s32.totalorder %s11, 1
    %p36 = scmp.ne.s32.totalorder %s31, %s33
    %p37 = scmp.eq.s32.totalorder %s11, 0
    %p38 = por %p36, %p37
    %p39 = scmp.ne.s32.totalorder %s31, %s33
    %p40 = scmp.eq.s32.totalorder %s16, 1
    %p41 = por %p39, %p40
    %p42 = scmp.ne.s32.totalorder %s33, %s34
    %p43 = scmp.eq.s32.totalorder %s16, 0
    %p44 = por %p42, %p43
    %p45 = scmp.ne.s32.totalorder %s33, %s34
    %p46 = scmp.eq.s32.totalorder %s17, 1
    %p47 = por %p45, %p46
    %p49 = scmp.ne.s32.totalorder %s34, %s48
    %p50 = scmp.eq.s32.totalorder %s17, 0
    %p51 = por %p49, %p50
    %s52 = ssub.s32 %s18, %s30
    %s53 = ssub.s32 %s19, %s26
    %s54 = sor.u32 %s52, %s53
    %p55 = scmp.eq.s32.totalorder %s54, 0
    %s57 = sadd.s32 %s56, 1
    %s58 = scalar_select %p55, %s56, %s57
    %p61 = pneg %p55
    %p62 = scmp.eq.s32.totalorder %s11, 1
    %p63 = por %p61, %p62
    %p64 = scmp.ne.s32.totalorder %s56, %s59
    %p65 = scmp.eq.s32.totalorder %s11, 0
    %p66 = por %p64, %p65
    %p67 = scmp.ne.s32.totalorder %s56, %s59
    %p68 = scmp.eq.s32.totalorder %s16, 1
    %p69 = por %p67, %p68
    %p70 = scmp.ne.s32.totalorder %s59, %s60
    %p71 = scmp.eq.s32.totalorder %s16, 0
    %p72 = por %p70, %p71
    %p73 = scmp.ne.s32.totalorder %s59, %s60
    %p74 = scmp.eq.s32.totalorder %s17, 1
    %p75 = por %p73, %p74
    %p77 = scmp.ne.s32.totalorder %s60, %s76
    %p78 = scmp.eq.s32.totalorder %s17, 0
    %p79 = por %p77, %p78
    %s81 = sadd.s32 %s80, 1
    %p84 = scmp.eq.s32.totalorder %s11, 1
    %p85 = scmp.ne.s32.totalorder %s80, %s82
    %p86 = scmp.eq.s32.totalorder %s11, 0
    %p87 = por %p85, %p86
    %p88 = scmp.ne.s32.totalorder %s80, %s82
    %p89 = scmp.eq.s32.totalorder %s16, 1
    %p90 = por %p88, %p89
    %p91 = scmp.ne.s32.totalorder %s82, %s83
    %p92 = scmp.eq.s32.totalorder %s16, 0
    %p93 = por %p91, %p92
    %p94 = scmp.ne.s32.totalorder %s82, %s83
    %p95 = scmp.eq.s32.totalorder %s17, 1
    %p96 = por %p94, %p95
    %p98 = scmp.ne.s32.totalorder %s83, %s97
    %p99 = scmp.eq.s32.totalorder %s17, 0
    %p100 = por %p98, %p99
    %s102 = sadd.s32 %s101, 1
    %p105 = scmp.eq.s32.totalorder %s11, 1
    %p106 = scmp.ne.s32.totalorder %s101, %s103
    %p107 = scmp.eq.s32.totalorder %s11, 0
    %p108 = por %p106, %p107
    %p109 = scmp.ne.s32.totalorder %s101, %s103
    %p110 = scmp.eq.s32.totalorder %s16, 1
    %p111 = por %p109, %p110
    %p112 = scmp.ne.s32.totalorder %s103, %s104
    %p113 = scmp.eq.s32.totalorder %s16, 0
    %p114 = por %p112, %p113
    %p115 = scmp.ne.s32.totalorder %s103, %s104
    %p116 = scmp.eq.s32.totalorder %s17, 1
    %p117 = por %p115, %p116
    %p119 = scmp.ne.s32.totalorder %s104, %s118
    %p120 = scmp.eq.s32.totalorder %s17, 0
    %p121 = por %p119, %p120
    %s122 = ssub.s32 %s18, %s30
    %s123 = ssub.s32 %s19, %s26
    %s124 = sor.u32 %s122, %s123
    %p125 = scmp.eq.s32.totalorder %s124, 0
    %s127 = sadd.s32 %s126, 1
    %s128 = scalar_select %p125, %s126, %s127
    %p131 = pneg %p125
    %p132 = scmp.eq.s32.totalorder %s11, 1
    %p133 = por %p131, %p132
    %p134 = scmp.ne.s32.totalorder %s126, %s129
    %p135 = scmp.eq.s32.totalorder %s11, 0
    %p136 = por %p134, %p135
    %p137 = scmp.ne.s32.totalorder %s126, %s129
    %p138 = scmp.eq.s32.totalorder %s16, 1
    %p139 = por %p137, %p138
    %p140 = scmp.ne.s32.totalorder %s129, %s130
    %p141 = scmp.eq.s32.totalorder %s16, 0
    %p142 = por %p140, %p141
    %p143 = scmp.ne.s32.totalorder %s129, %s130
    %p144 = scmp.eq.s32.totalorder %s17, 1
    %p145 = por %p143, %p144
    %p147 = scmp.ne.s32.totalorder %s130, %s146
    %p148 = scmp.eq.s32.totalorder %s17, 0
    %p149 = por %p147, %p148
    %p150 = scmp.le.s32.totalorder 1, %s11
    %p151 = scmp.lt.s32.totalorder %s11, 3
    %p152 = pnand %p150, %p151
    %p153 = pneg %p152
    // Predicated region
    $region9: #{upsample_pallas.1} parent=5 // pred_check
      _
    $region10: #{upsample_pallas.1} parent=5 // pred_check_branch
      %155 = sbr.rel (%p152) target = $region12
    $region11: #{upsample_pallas.1} parent=5 // pred_region
      %s156 = ssub.s32 %s11, 1
      // Predicated region
      $region13: #{upsample_pallas.1} parent=11 // pred_check
        %p157 = pneg %p44
      $region14: #{upsample_pallas.1} parent=11 // pred_check_branch
        %159 = sbr.rel (%p157) target = $region16
      $region15: #{upsample_pallas.1} parent=11 // pred_region
        _
      $region16: #{upsample_pallas.1} parent=11 // pred_fallthru
        _
      // Predicated region
      $region17: #{upsample_pallas.1} parent=11 // pred_check
        %p160 = pneg %p93
      $region18: #{upsample_pallas.1} parent=11 // pred_check_branch
        %162 = sbr.rel (%p160) target = $region20
      $region19: #{upsample_pallas.1} parent=11 // pred_region
        _
      $region20: #{upsample_pallas.1} parent=11 // pred_fallthru
        _
      // Predicated region
      $region21: #{upsample_pallas.1} parent=11 // pred_check
        %p163 = pneg %p114
      $region22: #{upsample_pallas.1} parent=11 // pred_check_branch
        %165 = sbr.rel (%p163) target = $region24
      $region23: #{upsample_pallas.1} parent=11 // pred_region
        _
      $region24: #{upsample_pallas.1} parent=11 // pred_fallthru
        _
    $region12: #{upsample_pallas.1} parent=5 // pred_fallthru
      _
    %p166 = scmp.lt.s32.totalorder %s11, 2
    // Predicated region
    $region25: #{upsample_pallas.1} parent=5 // pred_check
      %p167 = pneg %p166
    $region26: #{upsample_pallas.1} parent=5 // pred_check_branch
      %169 = sbr.rel (%p167) target = $region28
    $region27: #{upsample_pallas.1} parent=5 // pred_region
      // Predicated region
      $region29: #{upsample_pallas.1} parent=27 // pred_check
        %p170 = pneg %p66
      $region30: #{upsample_pallas.1} parent=27 // pred_check_branch
        %172 = sbr.rel (%p170) target = $region32
      $region31: #{upsample_pallas.1} parent=27 // pred_region
        %s173 = smul.u32 32, %s19
        %p174 = scmp.lt.s32.totalorder %s18, 1
        %s175 = scalar_select %p174, %s18, 1
        %p176 = scmp.lt.s32.totalorder %s173, 31
        %s177 = scalar_select %p176, %s173, 31
        %s178 = smul.addr %s177, 5
        %s179 = smul.addr %s175, 160
        %s180 = sadd.s32 %s178, %s179
        %s181 = smul.addr %s180, 4
        %s182 = scalar_lea.vmem %s1, %s181
        %s183 = smul.u32 32, %s19
      $region32: #{upsample_pallas.1} parent=27 // pred_fallthru
        _
    $region28: #{upsample_pallas.1} parent=5 // pred_fallthru
      _
    %p184 = scmp.le.s32.totalorder 1, %s11
    %p185 = scmp.lt.s32.totalorder %s11, 3
    %p186 = pnand %p184, %p185
    %p187 = pneg %p186
    // Predicated region
    $region33: #{upsample_pallas.1} parent=5 // pred_check
      _
    $region34: #{upsample_pallas.1} parent=5 // pred_check_branch
      %189 = sbr.rel (%p186) target = $region36
    $region35: #{upsample_pallas.1} parent=5 // pred_region
      %s190 = ssub.s32 %s11, 1
      %p191 = pneg %p44
      %p192 = pneg %p41
      %s193 = smul.u32 32, %s21
      %p194 = scmp.lt.s32.totalorder %s20, 1
      %s195 = scalar_select %p194, %s20, 1
      %p196 = scmp.lt.s32.totalorder %s193, 31
      %s197 = scalar_select %p196, %s193, 31
      %s198 = smul.addr %s197, 5
      %s199 = smul.addr %s195, 160
      %s200 = sadd.s32 %s198, %s199
      %s201 = smul.addr %s200, 4
      %s202 = scalar_lea.vmem %s1, %s201
      %p203 = pneg %p72
      %p204 = pneg %p69
      %p205 = pneg %p93
      %p206 = pneg %p90
      %p207 = pneg %p114
      %p208 = pneg %p111
      %p209 = pneg %p142
      %p210 = pneg %p139
      %s211 = smul.u32 32, %s21
      %p212 = scmp.lt.s32.totalorder %s20, 1
      %s213 = scalar_select %p212, %s20, 1
      %p214 = scmp.lt.s32.totalorder %s211, 31
      %s215 = scalar_select %p214, %s211, 31
      %s216 = smul.addr %s215, 2
      %s217 = smul.addr %s213, 64
      %s218 = sadd.s32 %s216, %s217
      %s219 = smul.addr %s218, 4
      %s220 = scalar_lea.vmem %s4, %s219
      %s221 = smul.u32 32, %s21
      %p222 = scmp.lt.s32.totalorder %s20, 1
      %s223 = scalar_select %p222, %s20, 1
      %p224 = scmp.lt.s32.totalorder %s221, 31
      %s225 = scalar_select %p224, %s221, 31
      %s226 = smul.addr %s225, 5
      %s227 = smul.addr %s223, 160
      %s228 = sadd.s32 %s226, %s227
      %s229 = smul.addr %s228, 4
      %s230 = scalar_lea.vmem %s1, %s229
      %s231 = smul.u32 32, %s21
      %s232 = smul.u32 32, %s21
      %p233 = scmp.lt.s32.totalorder %s20, 1
      %s234 = scalar_select %p233, %s20, 1
      %p235 = scmp.lt.s32.totalorder %s232, 31
      %s236 = scalar_select %p235, %s232, 31
      %s237 = smul.addr %s236, 2
      %s238 = smul.addr %s234, 64
      %s239 = sadd.s32 %s237, %s238
      %s240 = smul.addr %s239, 4
      %s241 = scalar_lea.vmem %s4, %s240
      %s242 = smul.u32 32, %s21
      %v244 = vld [vmem:[%s230] sm:$0xff]
      %v245 = vld [vmem:[%s230 + $0x8] sm:$0xff]
      %v246 = vld [vmem:[%s230 + $0x10] sm:$0xf]
      %v247 = vld [vmem:[%s230 + $0x14] sm:$0xff]
      %v248 = vld [vmem:[%s230 + $0x1c] sm:$0xff]
      %v249 = vld [vmem:[%s230 + $0x24] sm:$0xf]
      %v250 = vld [vmem:[%s230 + $0x28] sm:$0xff]
      %v251 = vld [vmem:[%s230 + $0x30] sm:$0xff]
      %v252 = vld [vmem:[%s230 + $0x38] sm:$0xf]
      %v253 = vld [vmem:[%s230 + $0x3c] sm:$0xff]
      %v254 = vld [vmem:[%s230 + $0x44] sm:$0xff]
      %v255 = vld [vmem:[%s230 + $0x4c] sm:$0xf]
      %v256 = vld [vmem:[%s230 + $0x50] sm:$0xff]
      %v257 = vld [vmem:[%s230 + $0x58] sm:$0xff]
      %v258 = vld [vmem:[%s230 + $0x60] sm:$0xf]
      %v259 = vld [vmem:[%s230 + $0x64] sm:$0xff]
      %v260 = vld [vmem:[%s230 + $0x6c] sm:$0xff]
      %v261 = vld [vmem:[%s230 + $0x74] sm:$0xf]
      %v262 = vld [vmem:[%s230 + $0x78] sm:$0xff]
      %v263 = vld [vmem:[%s230 + $0x80] sm:$0xff]
      %v264 = vld [vmem:[%s230 + $0x88] sm:$0xf]
      %v265 = vld [vmem:[%s230 + $0x8c] sm:$0xff]
      %v266 = vld [vmem:[%s230 + $0x94] sm:$0xff]
      %v267 = vld [vmem:[%s230 + $0x9c] sm:$0xf]
      %v268 = vld [vmem:[%s230 + $0xa0] sm:$0xff]
      %v269 = vld [vmem:[%s230 + $0xa8] sm:$0xff]
      %v270 = vld [vmem:[%s230 + $0xb0] sm:$0xf]
      %v271 = vld [vmem:[%s230 + $0xb4] sm:$0xff]
      %v272 = vld [vmem:[%s230 + $0xbc] sm:$0xff]
      %v273 = vld [vmem:[%s230 + $0xc4] sm:$0xf]
      %v274 = vld [vmem:[%s230 + $0xc8] sm:$0xff]
      %v275 = vld [vmem:[%s230 + $0xd0] sm:$0xff]
      %v276 = vld [vmem:[%s230 + $0xd8] sm:$0xf]
      %v277 = vld [vmem:[%s230 + $0xdc] sm:$0xff]
      %v278 = vld [vmem:[%s230 + $0xe4] sm:$0xff]
      %v279 = vld [vmem:[%s230 + $0xec] sm:$0xf]
      %v280 = vld [vmem:[%s230 + $0xf0] sm:$0xff]
      %v281 = vld [vmem:[%s230 + $0xf8] sm:$0xff]
      %v282 = vld [vmem:[%s230 + $0x100] sm:$0xf]
      %v283 = vld [vmem:[%s230 + $0x104] sm:$0xff]
      %v284 = vld [vmem:[%s230 + $0x10c] sm:$0xff]
      %v285 = vld [vmem:[%s230 + $0x114] sm:$0xf]
      %v286 = vld [vmem:[%s230 + $0x118] sm:$0xff]
      %v287 = vld [vmem:[%s230 + $0x120] sm:$0xff]
      %v288 = vld [vmem:[%s230 + $0x128] sm:$0xf]
      %v289 = vld [vmem:[%s230 + $0x12c] sm:$0xff]
      %v290 = vld [vmem:[%s230 + $0x134] sm:$0xff]
      %v291 = vld [vmem:[%s230 + $0x13c] sm:$0xf]
      %v292 = vld [vmem:[%s230 + $0x140] sm:$0xff]
      %v293 = vld [vmem:[%s230 + $0x148] sm:$0xff]
      %v294 = vld [vmem:[%s230 + $0x150] sm:$0xf]
      %v295 = vld [vmem:[%s230 + $0x154] sm:$0xff]
      %v296 = vld [vmem:[%s230 + $0x15c] sm:$0xff]
      %v297 = vld [vmem:[%s230 + $0x164] sm:$0xf]
      %v298 = vld [vmem:[%s230 + $0x168] sm:$0xff]
      %v299 = vld [vmem:[%s230 + $0x170] sm:$0xff]
      %v300 = vld [vmem:[%s230 + $0x178] sm:$0xf]
      %v301 = vld [vmem:[%s230 + $0x17c] sm:$0xff]
      %v302 = vld [vmem:[%s230 + $0x184] sm:$0xff]
      %v303 = vld [vmem:[%s230 + $0x18c] sm:$0xf]
      %v304 = vld [vmem:[%s230 + $0x190] sm:$0xff]
      %v305 = vld [vmem:[%s230 + $0x198] sm:$0xff]
      %v306 = vld [vmem:[%s230 + $0x1a0] sm:$0xf]
      %v307 = vld [vmem:[%s230 + $0x1a4] sm:$0xff]
      %v308 = vld [vmem:[%s230 + $0x1ac] sm:$0xff]
      %v309 = vld [vmem:[%s230 + $0x1b4] sm:$0xf]
      %v310 = vld [vmem:[%s230 + $0x1b8] sm:$0xff]
      %v311 = vld [vmem:[%s230 + $0x1c0] sm:$0xff]
      %v312 = vld [vmem:[%s230 + $0x1c8] sm:$0xf]
      %v313 = vld [vmem:[%s230 + $0x1cc] sm:$0xff]
      %v314 = vld [vmem:[%s230 + $0x1d4] sm:$0xff]
      %v315 = vld [vmem:[%s230 + $0x1dc] sm:$0xf]
      %v316 = vld [vmem:[%s230 + $0x1e0] sm:$0xff]
      %v317 = vld [vmem:[%s230 + $0x1e8] sm:$0xff]
      %v318 = vld [vmem:[%s230 + $0x1f0] sm:$0xf]
      %v319 = vld [vmem:[%s230 + $0x1f4] sm:$0xff]
      %v320 = vld [vmem:[%s230 + $0x1fc] sm:$0xff]
      %v321 = vld [vmem:[%s230 + $0x204] sm:$0xf]
      %v322 = vld [vmem:[%s230 + $0x208] sm:$0xff]
      %v323 = vld [vmem:[%s230 + $0x210] sm:$0xff]
      %v324 = vld [vmem:[%s230 + $0x218] sm:$0xf]
      %v325 = vld [vmem:[%s230 + $0x21c] sm:$0xff]
      %v326 = vld [vmem:[%s230 + $0x224] sm:$0xff]
      %v327 = vld [vmem:[%s230 + $0x22c] sm:$0xf]
      %v328 = vld [vmem:[%s230 + $0x230] sm:$0xff]
      %v329 = vld [vmem:[%s230 + $0x238] sm:$0xff]
      %v330 = vld [vmem:[%s230 + $0x240] sm:$0xf]
      %v331 = vld [vmem:[%s230 + $0x244] sm:$0xff]
      %v332 = vld [vmem:[%s230 + $0x24c] sm:$0xff]
      %v333 = vld [vmem:[%s230 + $0x254] sm:$0xf]
      %v334 = vld [vmem:[%s230 + $0x258] sm:$0xff]
      %v335 = vld [vmem:[%s230 + $0x260] sm:$0xff]
      %v336 = vld [vmem:[%s230 + $0x268] sm:$0xf]
      %v337 = vld [vmem:[%s230 + $0x26c] sm:$0xff]
      %v338 = vld [vmem:[%s230 + $0x274] sm:$0xff]
      %v339 = vld [vmem:[%s230 + $0x27c] sm:$0xf]
      %v340 = vld [vmem:[%s2] sm:$0xff]
      %v341 = vld [vmem:[%s2 + $0x8] sm:$0xff]
      %v342 = vld [vmem:[%s2 + $0x10] sm:$0xff]
      %v343 = vld [vmem:[%s2 + $0x18] sm:$0xff]
      %v344 = vld [vmem:[%s2 + $0x20] sm:$0xff]
      %v345 = vld [vmem:[%s2 + $0x28] sm:$0xff]
      %v346 = vld [vmem:[%s2 + $0x30] sm:$0xff]
      %v347 = vld [vmem:[%s2 + $0x38] sm:$0xff]
      %v348 = vld [vmem:[%s2 + $0x40] sm:$0xff]
      %v349 = vld [vmem:[%s2 + $0x48] sm:$0xff]
      %v350 = vld [vmem:[%s2 + $0x50] sm:$0xff]
      %v351 = vld [vmem:[%s2 + $0x58] sm:$0xff]
      %v352 = vld [vmem:[%s2 + $0x60] sm:$0xff]
      %v353 = vld [vmem:[%s2 + $0x68] sm:$0xff]
      %v354 = vld [vmem:[%s2 + $0x70] sm:$0xff]
      %v355 = vld [vmem:[%s2 + $0x78] sm:$0xff]
      %v356 = vld [vmem:[%s2 + $0x80] sm:$0xff]
      %v357 = vld [vmem:[%s2 + $0x88] sm:$0xff]
      %v358 = vld [vmem:[%s2 + $0x90] sm:$0xff]
      %v359 = vld [vmem:[%s2 + $0x98] sm:$0xff]
      %v360 = vld [vmem:[%s2 + $0xa0] sm:$0xff]
      %v361 = vld [vmem:[%s2 + $0xa8] sm:$0xff]
      %v362 = vld [vmem:[%s2 + $0xb0] sm:$0xff]
      %v363 = vld [vmem:[%s2 + $0xb8] sm:$0xff]
      %v364 = vld [vmem:[%s2 + $0xc0] sm:$0xff]
      %v365 = vld [vmem:[%s2 + $0xc8] sm:$0xff]
      %v366 = vld [vmem:[%s2 + $0xd0] sm:$0xff]
      %v367 = vld [vmem:[%s2 + $0xd8] sm:$0xff]
      %v368 = vld [vmem:[%s2 + $0xe0] sm:$0xff]
      %v369 = vld [vmem:[%s2 + $0xe8] sm:$0xff]
      %v370 = vld [vmem:[%s2 + $0xf0] sm:$0xff]
      %v371 = vld [vmem:[%s2 + $0xf8] sm:$0xff]
      %v372 = vld [vmem:[%s2 + $0x100] sm:$0xff]
      %v373 = vld [vmem:[%s2 + $0x108] sm:$0xff]
      %v374 = vld [vmem:[%s2 + $0x110] sm:$0xff]
      %v375 = vld [vmem:[%s2 + $0x118] sm:$0xff]
      %v376 = vld [vmem:[%s2 + $0x120] sm:$0xff]
      %v377 = vld [vmem:[%s2 + $0x128] sm:$0xff]
      %v378 = vld [vmem:[%s2 + $0x130] sm:$0xff]
      %v379 = vld [vmem:[%s2 + $0x138] sm:$0xff]
      %v380 = vld [vmem:[%s2 + $0x140] sm:$0xff]
      %v381 = vld [vmem:[%s2 + $0x148] sm:$0xff]
      %v382 = vld [vmem:[%s2 + $0x150] sm:$0xff]
      %v383 = vld [vmem:[%s2 + $0x158] sm:$0xff]
      %v384 = vld [vmem:[%s2 + $0x160] sm:$0xff]
      %v385 = vld [vmem:[%s2 + $0x168] sm:$0xff]
      %v386 = vld [vmem:[%s2 + $0x170] sm:$0xff]
      %v387 = vld [vmem:[%s2 + $0x178] sm:$0xff]
      %v388 = vld [vmem:[%s2 + $0x180] sm:$0xff]
      %v389 = vld [vmem:[%s2 + $0x188] sm:$0xff]
      %v390 = vld [vmem:[%s2 + $0x190] sm:$0xff]
      %v391 = vld [vmem:[%s2 + $0x198] sm:$0xff]
      %v392 = vld [vmem:[%s2 + $0x1a0] sm:$0xff]
      %v393 = vld [vmem:[%s2 + $0x1a8] sm:$0xff]
      %v394 = vld [vmem:[%s2 + $0x1b0] sm:$0xff]
      %v395 = vld [vmem:[%s2 + $0x1b8] sm:$0xff]
      %v396 = vld [vmem:[%s2 + $0x1c0] sm:$0xff]
      %v397 = vld [vmem:[%s2 + $0x1c8] sm:$0xff]
      %v398 = vld [vmem:[%s2 + $0x1d0] sm:$0xff]
      %v399 = vld [vmem:[%s2 + $0x1d8] sm:$0xff]
      %v400 = vld [vmem:[%s2 + $0x1e0] sm:$0xff]
      %v401 = vld [vmem:[%s2 + $0x1e8] sm:$0xff]
      %v402 = vld [vmem:[%s2 + $0x1f0] sm:$0xff]
      %v403 = vld [vmem:[%s2 + $0x1f8] sm:$0xff]
      %v404 = vld [vmem:[%s2 + $0x200] sm:$0xff]
      %v405 = vld [vmem:[%s2 + $0x208] sm:$0xff]
      %v406 = vld [vmem:[%s2 + $0x210] sm:$0xff]
      %v407 = vld [vmem:[%s2 + $0x218] sm:$0xff]
      %v408 = vld [vmem:[%s2 + $0x220] sm:$0xff]
      %v409 = vld [vmem:[%s2 + $0x228] sm:$0xff]
      %v410 = vld [vmem:[%s2 + $0x230] sm:$0xff]
      %v411 = vld [vmem:[%s2 + $0x238] sm:$0xff]
      %v508 = vunpack.c.l.b16 %v244
      %v509 = vunpack.c.h.b16 %v244
      %v510 = vunpack.c.l.b16 %v245
      %v511 = vunpack.c.h.b16 %v245
      %v512 = vunpack.c.l.b16 %v246
      %v513 = vunpack.c.l.b16 %v247
      %v514 = vunpack.c.h.b16 %v247
      %v515 = vunpack.c.l.b16 %v248
      %v516 = vunpack.c.h.b16 %v248
      %v517 = vunpack.c.l.b16 %v249
      %v518 = vunpack.c.l.b16 %v250
      %v519 = vunpack.c.h.b16 %v250
      %v520 = vunpack.c.l.b16 %v251
      %v521 = vunpack.c.h.b16 %v251
      %v522 = vunpack.c.l.b16 %v252
      %v523 = vunpack.c.l.b16 %v253
      %v524 = vunpack.c.h.b16 %v253
      %v525 = vunpack.c.l.b16 %v254
      %v526 = vunpack.c.h.b16 %v254
      %v527 = vunpack.c.l.b16 %v255
      %v528 = vunpack.c.l.b16 %v256
      %v529 = vunpack.c.h.b16 %v256
      %v530 = vunpack.c.l.b16 %v257
      %v531 = vunpack.c.h.b16 %v257
      %v532 = vunpack.c.l.b16 %v258
      %v533 = vunpack.c.l.b16 %v259
      %v534 = vunpack.c.h.b16 %v259
      %v535 = vunpack.c.l.b16 %v260
      %v536 = vunpack.c.h.b16 %v260
      %v537 = vunpack.c.l.b16 %v261
      %v538 = vunpack.c.l.b16 %v262
      %v539 = vunpack.c.h.b16 %v262
      %v540 = vunpack.c.l.b16 %v263
      %v541 = vunpack.c.h.b16 %v263
      %v542 = vunpack.c.l.b16 %v264
      %v543 = vunpack.c.l.b16 %v265
      %v544 = vunpack.c.h.b16 %v265
      %v545 = vunpack.c.l.b16 %v266
      %v546 = vunpack.c.h.b16 %v266
      %v547 = vunpack.c.l.b16 %v267
      %v548 = vunpack.c.l.b16 %v268
      %v549 = vunpack.c.h.b16 %v268
      %v550 = vunpack.c.l.b16 %v269
      %v551 = vunpack.c.h.b16 %v269
      %v552 = vunpack.c.l.b16 %v270
      %v553 = vunpack.c.l.b16 %v271
      %v554 = vunpack.c.h.b16 %v271
      %v555 = vunpack.c.l.b16 %v272
      %v556 = vunpack.c.h.b16 %v272
      %v557 = vunpack.c.l.b16 %v273
      %v558 = vunpack.c.l.b16 %v274
      %v559 = vunpack.c.h.b16 %v274
      %v560 = vunpack.c.l.b16 %v275
      %v561 = vunpack.c.h.b16 %v275
      %v562 = vunpack.c.l.b16 %v276
      %v563 = vunpack.c.l.b16 %v277
      %v564 = vunpack.c.h.b16 %v277
      %v565 = vunpack.c.l.b16 %v278
      %v566 = vunpack.c.h.b16 %v278
      %v567 = vunpack.c.l.b16 %v279
      %v568 = vunpack.c.l.b16 %v280
      %v569 = vunpack.c.h.b16 %v280
      %v570 = vunpack.c.l.b16 %v281
      %v571 = vunpack.c.h.b16 %v281
      %v572 = vunpack.c.l.b16 %v282
      %v573 = vunpack.c.l.b16 %v283
      %v574 = vunpack.c.h.b16 %v283
      %v575 = vunpack.c.l.b16 %v284
      %v576 = vunpack.c.h.b16 %v284
      %v577 = vunpack.c.l.b16 %v285
      %v578 = vunpack.c.l.b16 %v286
      %v579 = vunpack.c.h.b16 %v286
      %v580 = vunpack.c.l.b16 %v287
      %v581 = vunpack.c.h.b16 %v287
      %v582 = vunpack.c.l.b16 %v288
      %v583 = vunpack.c.l.b16 %v289
      %v584 = vunpack.c.h.b16 %v289
      %v585 = vunpack.c.l.b16 %v290
      %v586 = vunpack.c.h.b16 %v290
      %v587 = vunpack.c.l.b16 %v291
      %v588 = vunpack.c.l.b16 %v292
      %v589 = vunpack.c.h.b16 %v292
      %v590 = vunpack.c.l.b16 %v293
      %v591 = vunpack.c.h.b16 %v293
      %v592 = vunpack.c.l.b16 %v294
      %v593 = vunpack.c.l.b16 %v295
      %v594 = vunpack.c.h.b16 %v295
      %v595 = vunpack.c.l.b16 %v296
      %v596 = vunpack.c.h.b16 %v296
      %v597 = vunpack.c.l.b16 %v297
      %v598 = vunpack.c.l.b16 %v298
      %v599 = vunpack.c.h.b16 %v298
      %v600 = vunpack.c.l.b16 %v299
      %v601 = vunpack.c.h.b16 %v299
      %v602 = vunpack.c.l.b16 %v300
      %v603 = vunpack.c.l.b16 %v301
      %v604 = vunpack.c.h.b16 %v301
      %v605 = vunpack.c.l.b16 %v302
      %v606 = vunpack.c.h.b16 %v302
      %v607 = vunpack.c.l.b16 %v303
      %v608 = vunpack.c.l.b16 %v304
      %v609 = vunpack.c.h.b16 %v304
      %v610 = vunpack.c.l.b16 %v305
      %v611 = vunpack.c.h.b16 %v305
      %v612 = vunpack.c.l.b16 %v306
      %v613 = vunpack.c.l.b16 %v307
      %v614 = vunpack.c.h.b16 %v307
      %v615 = vunpack.c.l.b16 %v308
      %v616 = vunpack.c.h.b16 %v308
      %v617 = vunpack.c.l.b16 %v309
      %v618 = vunpack.c.l.b16 %v310
      %v619 = vunpack.c.h.b16 %v310
      %v620 = vunpack.c.l.b16 %v311
      %v621 = vunpack.c.h.b16 %v311
      %v622 = vunpack.c.l.b16 %v312
      %v623 = vunpack.c.l.b16 %v313
      %v624 = vunpack.c.h.b16 %v313
      %v625 = vunpack.c.l.b16 %v314
      %v626 = vunpack.c.h.b16 %v314
      %v627 = vunpack.c.l.b16 %v315
      %v628 = vunpack.c.l.b16 %v316
      %v629 = vunpack.c.h.b16 %v316
      %v630 = vunpack.c.l.b16 %v317
      %v631 = vunpack.c.h.b16 %v317
      %v632 = vunpack.c.l.b16 %v318
      %v633 = vunpack.c.l.b16 %v319
      %v634 = vunpack.c.h.b16 %v319
      %v635 = vunpack.c.l.b16 %v320
      %v636 = vunpack.c.h.b16 %v320
      %v637 = vunpack.c.l.b16 %v321
      %v638 = vunpack.c.l.b16 %v322
      %v639 = vunpack.c.h.b16 %v322
      %v640 = vunpack.c.l.b16 %v323
      %v641 = vunpack.c.h.b16 %v323
      %v642 = vunpack.c.l.b16 %v324
      %v643 = vunpack.c.l.b16 %v325
      %v644 = vunpack.c.h.b16 %v325
      %v645 = vunpack.c.l.b16 %v326
      %v646 = vunpack.c.h.b16 %v326
      %v647 = vunpack.c.l.b16 %v327
      %v648 = vunpack.c.l.b16 %v328
      %v649 = vunpack.c.h.b16 %v328
      %v650 = vunpack.c.l.b16 %v329
      %v651 = vunpack.c.h.b16 %v329
      %v652 = vunpack.c.l.b16 %v330
      %v653 = vunpack.c.l.b16 %v331
      %v654 = vunpack.c.h.b16 %v331
      %v655 = vunpack.c.l.b16 %v332
      %v656 = vunpack.c.h.b16 %v332
      %v657 = vunpack.c.l.b16 %v333
      %v658 = vunpack.c.l.b16 %v334
      %v659 = vunpack.c.h.b16 %v334
      %v660 = vunpack.c.l.b16 %v335
      %v661 = vunpack.c.h.b16 %v335
      %v662 = vunpack.c.l.b16 %v336
      %v663 = vunpack.c.l.b16 %v337
      %v664 = vunpack.c.h.b16 %v337
      %v665 = vunpack.c.l.b16 %v338
      %v666 = vunpack.c.h.b16 %v338
      %v667 = vunpack.c.l.b16 %v339
      %v668 = vpack.c.b16 %v513, %v508
      %v669 = vpack.c.b16 %v514, %v509
      %v670 = vpack.c.b16 %v515, %v510
      %v671 = vpack.c.b16 %v516, %v511
      %v672 = vpack.c.b16 %v517, %v512
      %v673 = vpack.c.b16 %v523, %v518
      %v674 = vpack.c.b16 %v524, %v519
      %v675 = vpack.c.b16 %v525, %v520
      %v676 = vpack.c.b16 %v526, %v521
      %v677 = vpack.c.b16 %v527, %v522
      %v678 = vpack.c.b16 %v533, %v528
      %v679 = vpack.c.b16 %v534, %v529
      %v680 = vpack.c.b16 %v535, %v530
      %v681 = vpack.c.b16 %v536, %v531
      %v682 = vpack.c.b16 %v537, %v532
      %v683 = vpack.c.b16 %v543, %v538
      %v684 = vpack.c.b16 %v544, %v539
      %v685 = vpack.c.b16 %v545, %v540
      %v686 = vpack.c.b16 %v546, %v541
      %v687 = vpack.c.b16 %v547, %v542
      %v688 = vpack.c.b16 %v553, %v548
      %v689 = vpack.c.b16 %v554, %v549
      %v690 = vpack.c.b16 %v555, %v550
      %v691 = vpack.c.b16 %v556, %v551
      %v692 = vpack.c.b16 %v557, %v552
      %v693 = vpack.c.b16 %v563, %v558
      %v694 = vpack.c.b16 %v564, %v559
      %v695 = vpack.c.b16 %v565, %v560
      %v696 = vpack.c.b16 %v566, %v561
      %v697 = vpack.c.b16 %v567, %v562
      %v698 = vpack.c.b16 %v573, %v568
      %v699 = vpack.c.b16 %v574, %v569
      %v700 = vpack.c.b16 %v575, %v570
      %v701 = vpack.c.b16 %v576, %v571
      %v702 = vpack.c.b16 %v577, %v572
      %v703 = vpack.c.b16 %v583, %v578
      %v704 = vpack.c.b16 %v584, %v579
      %v705 = vpack.c.b16 %v585, %v580
      %v706 = vpack.c.b16 %v586, %v581
      %v707 = vpack.c.b16 %v587, %v582
      %v708 = vpack.c.b16 %v593, %v588
      %v709 = vpack.c.b16 %v594, %v589
      %v710 = vpack.c.b16 %v595, %v590
      %v711 = vpack.c.b16 %v596, %v591
      %v712 = vpack.c.b16 %v597, %v592
      %v713 = vpack.c.b16 %v603, %v598
      %v714 = vpack.c.b16 %v604, %v599
      %v715 = vpack.c.b16 %v605, %v600
      %v716 = vpack.c.b16 %v606, %v601
      %v717 = vpack.c.b16 %v607, %v602
      %v718 = vpack.c.b16 %v613, %v608
      %v719 = vpack.c.b16 %v614, %v609
      %v720 = vpack.c.b16 %v615, %v610
      %v721 = vpack.c.b16 %v616, %v611
      %v722 = vpack.c.b16 %v617, %v612
      %v723 = vpack.c.b16 %v623, %v618
      %v724 = vpack.c.b16 %v624, %v619
      %v725 = vpack.c.b16 %v625, %v620
      %v726 = vpack.c.b16 %v626, %v621
      %v727 = vpack.c.b16 %v627, %v622
      %v728 = vpack.c.b16 %v633, %v628
      %v729 = vpack.c.b16 %v634, %v629
      %v730 = vpack.c.b16 %v635, %v630
      %v731 = vpack.c.b16 %v636, %v631
      %v732 = vpack.c.b16 %v637, %v632
      %v733 = vpack.c.b16 %v643, %v638
      %v734 = vpack.c.b16 %v644, %v639
      %v735 = vpack.c.b16 %v645, %v640
      %v736 = vpack.c.b16 %v646, %v641
      %v737 = vpack.c.b16 %v647, %v642
      %v738 = vpack.c.b16 %v653, %v648
      %v739 = vpack.c.b16 %v654, %v649
      %v740 = vpack.c.b16 %v655, %v650
      %v741 = vpack.c.b16 %v656, %v651
      %v742 = vpack.c.b16 %v657, %v652
      %v743 = vpack.c.b16 %v663, %v658
      %v744 = vpack.c.b16 %v664, %v659
      %v745 = vpack.c.b16 %v665, %v660
      %v746 = vpack.c.b16 %v666, %v661
      %v747 = vpack.c.b16 %v667, %v662
      %v884 = vunpack.c.l.b16 %v340
      %v885 = vunpack.c.h.b16 %v340
      %v886 = vunpack.c.l.b16 %v341
      %v887 = vunpack.c.h.b16 %v341
      %v888 = vunpack.c.l.b16 %v342
      %v889 = vunpack.c.h.b16 %v342
      %v890 = vunpack.c.l.b16 %v343
      %v891 = vunpack.c.h.b16 %v343
      %v892 = vunpack.c.l.b16 %v344
      %v893 = vunpack.c.h.b16 %v344
      %v894 = vunpack.c.l.b16 %v345
      %v895 = vunpack.c.h.b16 %v345
      %v896 = vunpack.c.l.b16 %v346
      %v897 = vunpack.c.h.b16 %v346
      %v898 = vunpack.c.l.b16 %v347
      %v899 = vunpack.c.h.b16 %v347
      %v900 = vunpack.c.l.b16 %v348
      %v901 = vunpack.c.h.b16 %v348
      %v902 = vunpack.c.l.b16 %v349
      %v903 = vunpack.c.h.b16 %v349
      %v904 = vunpack.c.l.b16 %v350
      %v905 = vunpack.c.h.b16 %v350
      %v906 = vunpack.c.l.b16 %v351
      %v907 = vunpack.c.h.b16 %v351
      %v908 = vunpack.c.l.b16 %v352
      %v909 = vunpack.c.h.b16 %v352
      %v910 = vunpack.c.l.b16 %v353
      %v911 = vunpack.c.h.b16 %v353
      %v912 = vunpack.c.l.b16 %v354
      %v913 = vunpack.c.h.b16 %v354
      %v914 = vunpack.c.l.b16 %v355
      %v915 = vunpack.c.h.b16 %v355
      %v916 = vunpack.c.l.b16 %v356
      %v917 = vunpack.c.h.b16 %v356
      %v918 = vunpack.c.l.b16 %v357
      %v919 = vunpack.c.h.b16 %v357
      %v920 = vunpack.c.l.b16 %v358
      %v921 = vunpack.c.h.b16 %v358
      %v922 = vunpack.c.l.b16 %v359
      %v923 = vunpack.c.h.b16 %v359
      %v924 = vunpack.c.l.b16 %v360
      %v925 = vunpack.c.h.b16 %v360
      %v926 = vunpack.c.l.b16 %v361
      %v927 = vunpack.c.h.b16 %v361
      %v928 = vunpack.c.l.b16 %v362
      %v929 = vunpack.c.h.b16 %v362
      %v930 = vunpack.c.l.b16 %v363
      %v931 = vunpack.c.h.b16 %v363
      %v932 = vunpack.c.l.b16 %v364
      %v933 = vunpack.c.h.b16 %v364
      %v934 = vunpack.c.l.b16 %v365
      %v935 = vunpack.c.h.b16 %v365
      %v936 = vunpack.c.l.b16 %v366
      %v937 = vunpack.c.h.b16 %v366
      %v938 = vunpack.c.l.b16 %v367
      %v939 = vunpack.c.h.b16 %v367
      %v940 = vunpack.c.l.b16 %v368
      %v941 = vunpack.c.h.b16 %v368
      %v942 = vunpack.c.l.b16 %v369
      %v943 = vunpack.c.h.b16 %v369
      %v944 = vunpack.c.l.b16 %v370
      %v945 = vunpack.c.h.b16 %v370
      %v946 = vunpack.c.l.b16 %v371
      %v947 = vunpack.c.h.b16 %v371
      %v948 = vunpack.c.l.b16 %v372
      %v949 = vunpack.c.h.b16 %v372
      %v950 = vunpack.c.l.b16 %v373
      %v951 = vunpack.c.h.b16 %v373
      %v952 = vunpack.c.l.b16 %v374
      %v953 = vunpack.c.h.b16 %v374
      %v954 = vunpack.c.l.b16 %v375
      %v955 = vunpack.c.h.b16 %v375
      %v956 = vunpack.c.l.b16 %v376
      %v957 = vunpack.c.h.b16 %v376
      %v958 = vunpack.c.l.b16 %v377
      %v959 = vunpack.c.h.b16 %v377
      %v960 = vunpack.c.l.b16 %v378
      %v961 = vunpack.c.h.b16 %v378
      %v962 = vunpack.c.l.b16 %v379
      %v963 = vunpack.c.h.b16 %v379
      %v964 = vunpack.c.l.b16 %v380
      %v965 = vunpack.c.h.b16 %v380
      %v966 = vunpack.c.l.b16 %v381
      %v967 = vunpack.c.h.b16 %v381
      %v968 = vunpack.c.l.b16 %v382
      %v969 = vunpack.c.h.b16 %v382
      %v970 = vunpack.c.l.b16 %v383
      %v971 = vunpack.c.h.b16 %v383
      %v972 = vunpack.c.l.b16 %v384
      %v973 = vunpack.c.h.b16 %v384
      %v974 = vunpack.c.l.b16 %v385
      %v975 = vunpack.c.h.b16 %v385
      %v976 = vunpack.c.l.b16 %v386
      %v977 = vunpack.c.h.b16 %v386
      %v978 = vunpack.c.l.b16 %v387
      %v979 = vunpack.c.h.b16 %v387
      %v980 = vunpack.c.l.b16 %v388
      %v981 = vunpack.c.h.b16 %v388
      %v982 = vunpack.c.l.b16 %v389
      %v983 = vunpack.c.h.b16 %v389
      %v984 = vunpack.c.l.b16 %v390
      %v985 = vunpack.c.h.b16 %v390
      %v986 = vunpack.c.l.b16 %v391
      %v987 = vunpack.c.h.b16 %v391
      %v988 = vunpack.c.l.b16 %v392
      %v989 = vunpack.c.h.b16 %v392
      %v990 = vunpack.c.l.b16 %v393
      %v991 = vunpack.c.h.b16 %v393
      %v992 = vunpack.c.l.b16 %v394
      %v993 = vunpack.c.h.b16 %v394
      %v994 = vunpack.c.l.b16 %v395
      %v995 = vunpack.c.h.b16 %v395
      %v996 = vunpack.c.l.b16 %v396
      %v997 = vunpack.c.h.b16 %v396
      %v998 = vunpack.c.l.b16 %v397
      %v999 = vunpack.c.h.b16 %v397
      %v1000 = vunpack.c.l.b16 %v398
      %v1001 = vunpack.c.h.b16 %v398
      %v1002 = vunpack.c.l.b16 %v399
      %v1003 = vunpack.c.h.b16 %v399
      %v1004 = vunpack.c.l.b16 %v400
      %v1005 = vunpack.c.h.b16 %v400
      %v1006 = vunpack.c.l.b16 %v401
      %v1007 = vunpack.c.h.b16 %v401
      %v1008 = vunpack.c.l.b16 %v402
      %v1009 = vunpack.c.h.b16 %v402
      %v1010 = vunpack.c.l.b16 %v403
      %v1011 = vunpack.c.h.b16 %v403
      %v1012 = vunpack.c.l.b16 %v404
      %v1013 = vunpack.c.h.b16 %v404
      %v1014 = vunpack.c.l.b16 %v405
      %v1015 = vunpack.c.h.b16 %v405
      %v1016 = vunpack.c.l.b16 %v406
      %v1017 = vunpack.c.h.b16 %v406
      %v1018 = vunpack.c.l.b16 %v407
      %v1019 = vunpack.c.h.b16 %v407
      %v1020 = vunpack.c.l.b16 %v408
      %v1021 = vunpack.c.h.b16 %v408
      %v1022 = vunpack.c.l.b16 %v409
      %v1023 = vunpack.c.h.b16 %v409
      %v1024 = vunpack.c.l.b16 %v410
      %v1025 = vunpack.c.h.b16 %v410
      %v1026 = vunpack.c.l.b16 %v411
      %v1027 = vunpack.c.h.b16 %v411
      %v1028 = vpack.c.b16 %v886, %v884
      %v1029 = vpack.c.b16 %v887, %v885
      %v1030 = vpack.c.b16 %v890, %v888
      %v1031 = vpack.c.b16 %v891, %v889
      %v1032 = vpack.c.b16 %v894, %v892
      %v1033 = vpack.c.b16 %v895, %v893
      %v1034 = vpack.c.b16 %v898, %v896
      %v1035 = vpack.c.b16 %v899, %v897
      %v1036 = vpack.c.b16 %v902, %v900
      %v1037 = vpack.c.b16 %v903, %v901
      %v1038 = vpack.c.b16 %v906, %v904
      %v1039 = vpack.c.b16 %v907, %v905
      %v1040 = vpack.c.b16 %v910, %v908
      %v1041 = vpack.c.b16 %v911, %v909
      %v1042 = vpack.c.b16 %v914, %v912
      %v1043 = vpack.c.b16 %v915, %v913
      %v1044 = vpack.c.b16 %v918, %v916
      %v1045 = vpack.c.b16 %v919, %v917
      %v1046 = vpack.c.b16 %v922, %v920
      %v1047 = vpack.c.b16 %v923, %v921
      %v1048 = vpack.c.b16 %v926, %v924
      %v1049 = vpack.c.b16 %v927, %v925
      %v1050 = vpack.c.b16 %v930, %v928
      %v1051 = vpack.c.b16 %v931, %v929
      %v1052 = vpack.c.b16 %v934, %v932
      %v1053 = vpack.c.b16 %v935, %v933
      %v1054 = vpack.c.b16 %v938, %v936
      %v1055 = vpack.c.b16 %v939, %v937
      %v1056 = vpack.c.b16 %v942, %v940
      %v1057 = vpack.c.b16 %v943, %v941
      %v1058 = vpack.c.b16 %v946, %v944
      %v1059 = vpack.c.b16 %v947, %v945
      %v1060 = vpack.c.b16 %v950, %v948
      %v1061 = vpack.c.b16 %v951, %v949
      %v1062 = vpack.c.b16 %v954, %v952
      %v1063 = vpack.c.b16 %v955, %v953
      %v1064 = vpack.c.b16 %v958, %v956
      %v1065 = vpack.c.b16 %v959, %v957
      %v1066 = vpack.c.b16 %v962, %v960
      %v1067 = vpack.c.b16 %v963, %v961
      %v1068 = vpack.c.b16 %v966, %v964
      %v1069 = vpack.c.b16 %v967, %v965
      %v1070 = vpack.c.b16 %v970, %v968
      %v1071 = vpack.c.b16 %v971, %v969
      %v1072 = vpack.c.b16 %v974, %v972
      %v1073 = vpack.c.b16 %v975, %v973
      %v1074 = vpack.c.b16 %v978, %v976
      %v1075 = vpack.c.b16 %v979, %v977
      %v1076 = vpack.c.b16 %v982, %v980
      %v1077 = vpack.c.b16 %v983, %v981
      %v1078 = vpack.c.b16 %v986, %v984
      %v1079 = vpack.c.b16 %v987, %v985
      %v1080 = vpack.c.b16 %v990, %v988
      %v1081 = vpack.c.b16 %v991, %v989
      %v1082 = vpack.c.b16 %v994, %v992
      %v1083 = vpack.c.b16 %v995, %v993
      %v1084 = vpack.c.b16 %v998, %v996
      %v1085 = vpack.c.b16 %v999, %v997
      %v1086 = vpack.c.b16 %v1002, %v1000
      %v1087 = vpack.c.b16 %v1003, %v1001
      %v1088 = vpack.c.b16 %v1006, %v1004
      %v1089 = vpack.c.b16 %v1007, %v1005
      %v1090 = vpack.c.b16 %v1010, %v1008
      %v1091 = vpack.c.b16 %v1011, %v1009
      %v1092 = vpack.c.b16 %v1014, %v1012
      %v1093 = vpack.c.b16 %v1015, %v1013
      %v1094 = vpack.c.b16 %v1018, %v1016
      %v1095 = vpack.c.b16 %v1019, %v1017
      %v1096 = vpack.c.b16 %v1022, %v1020
      %v1097 = vpack.c.b16 %v1023, %v1021
      %v1098 = vpack.c.b16 %v1026, %v1024
      %v1099 = vpack.c.b16 %v1027, %v1025
      %vm1172 = vcmask 523264
      %v1174 = vsel %vm1172, %v672, 0
      %v1177 = vsel %vm1172, %v677, 0
      %v1180 = vsel %vm1172, %v682, 0
      %v1183 = vsel %vm1172, %v687, 0
      %v1186 = vsel %vm1172, %v692, 0
      %v1189 = vsel %vm1172, %v697, 0
      %v1192 = vsel %vm1172, %v702, 0
      %v1195 = vsel %vm1172, %v707, 0
      %v1198 = vsel %vm1172, %v712, 0
      %v1201 = vsel %vm1172, %v717, 0
      %v1204 = vsel %vm1172, %v722, 0
      %v1207 = vsel %vm1172, %v727, 0
      %v1210 = vsel %vm1172, %v732, 0
      %v1213 = vsel %vm1172, %v737, 0
      %v1216 = vsel %vm1172, %v742, 0
      %v1219 = vsel %vm1172, %v747, 0
      %1221 = vmatprep.subr.bf16.mxu0 %v1029
      %1222 = vmatpush1.bf16.msra.mxu0 %v1028
      %1223 = vmatprep.subr.bf16.mxu0 %v1031
      %1224 = vmatpush1.bf16.msra.mxu0 %v1030
      %1225 = vmatprep.subr.bf16.mxu0 %v1033
      %1226 = vmatpush1.bf16.msra.mxu0 %v1032
      %1227 = vmatprep.subr.bf16.mxu0 %v1035
      %1228 = vmatpush1.bf16.msra.mxu0 %v1034
      %1229 = vmatprep.subr.bf16.mxu0 %v1037
      %1230 = vmatpush1.bf16.msra.mxu0 %v1036
      %1231 = vmatprep.subr.bf16.mxu0 %v1039
      %1232 = vmatpush1.bf16.msra.mxu0 %v1038
      %1233 = vmatprep.subr.bf16.mxu0 %v1041
      %1234 = vmatpush1.bf16.msra.mxu0 %v1040
      %1235 = vmatprep.subr.bf16.mxu0 %v1043
      %1236 = vmatpush1.bf16.msra.mxu0 %v1042
      %1237 = vmatprep.subr.bf16.mxu0 %v1045
      %1238 = vmatpush1.bf16.msra.mxu0 %v1044
      %1239 = vmatprep.subr.bf16.mxu0 %v1047
      %1240 = vmatpush1.bf16.msra.mxu0 %v1046
      %1241 = vmatprep.subr.bf16.mxu0 %v1049
      %1242 = vmatpush1.bf16.msra.mxu0 %v1048
      %1243 = vmatprep.subr.bf16.mxu0 %v1051
      %1244 = vmatpush1.bf16.msra.mxu0 %v1050
      %1245 = vmatprep.subr.bf16.mxu0 %v1053
      %1246 = vmatpush1.bf16.msra.mxu0 %v1052
      %1247 = vmatprep.subr.bf16.mxu0 %v1055
      %1248 = vmatpush1.bf16.msra.mxu0 %v1054
      %1249 = vmatprep.subr.bf16.mxu0 %v1057
      %1250 = vmatpush1.bf16.msra.mxu0 %v1056
      %1251 = vmatprep.subr.bf16.mxu0 %v1059
      %1252 = vmatpush1.bf16.msra.mxu0 %v1058
      %1253 = vmatprep.mubr.bf16.mxu0 %v669
      %1254 = vmatmul.mubr.bf16.gmra.mrb[0].mxu0 %v668
      %v1255 = vpop.f32.mrb[0].mxu0
      %v1256 = vadd.f32 0.0, %v1255
      %v1257 = vpop.f32.mrb[0].mxu0
      %v1258 = vadd.f32 0.0, %v1257
      %v1259 = vpop.f32.mrb[0].mxu0
      %v1260 = vadd.f32 0.0, %v1259
      %v1261 = vpop.f32.mrb[0].mxu0
      %v1262 = vadd.f32 0.0, %v1261
      %1263 = vmatprep.mubr.bf16.mxu0 %v674
      %1264 = vmatmul.mubr.bf16.gmra.mrb[0].mxu0 %v673
      %v1265 = vpop.f32.mrb[0].mxu0
      %v1266 = vadd.f32 0.0, %v1265
      %v1267 = vpop.f32.mrb[0].mxu0
      %v1268 = vadd.f32 0.0, %v1267
      %v1269 = vpop.f32.mrb[0].mxu0
      %v1270 = vadd.f32 0.0, %v1269
      %v1271 = vpop.f32.mrb[0].mxu0
      %v1272 = vadd.f32 0.0, %v1271
      %1273 = vmatprep.mubr.bf16.mxu0 %v679
      %1274 = vmatmul.mubr.bf16.gmra.mrb[0].mxu0 %v678
      %v1275 = vpop.f32.mrb[0].mxu0
      %v1276 = vadd.f32 0.0, %v1275
      %v1277 = vpop.f32.mrb[0].mxu0
      %v1278 = vadd.f32 0.0, %v1277
      %v1279 = vpop.f32.mrb[0].mxu0
      %v1280 = vadd.f32 0.0, %v1279
      %v1281 = vpop.f32.mrb[0].mxu0
      %v1282 = vadd.f32 0.0, %v1281
      %1283 = vmatprep.mubr.bf16.mxu0 %v684
      %1284 = vmatmul.mubr.bf16.gmra.mrb[0].mxu0 %v683
      %v1285 = vpop.f32.mrb[0].mxu0
      %v1286 = vadd.f32 0.0, %v1285
      %v1287 = vpop.f32.mrb[0].mxu0
      %v1288 = vadd.f32 0.0, %v1287
      %v1289 = vpop.f32.mrb[0].mxu0
      %v1290 = vadd.f32 0.0, %v1289
      %v1291 = vpop.f32.mrb[0].mxu0
      %v1292 = vadd.f32 0.0, %v1291
      %1293 = vmatprep.mubr.bf16.mxu0 %v689
      %1294 = vmatmul.mubr.bf16.gmra.mrb[0].mxu0 %v688
      %v1295 = vpop.f32.mrb[0].mxu0
      %v1296 = vadd.f32 0.0, %v1295
      %v1297 = vpop.f32.mrb[0].mxu0
      %v1298 = vadd.f32 0.0, %v1297
      %v1299 = vpop.f32.mrb[0].mxu0
      %v1300 = vadd.f32 0.0, %v1299
      %v1301 = vpop.f32.mrb[0].mxu0
      %v1302 = vadd.f32 0.0, %v1301
      %1303 = vmatprep.mubr.bf16.mxu0 %v694
      %1304 = vmatmul.mubr.bf16.gmra.mrb[0].mxu0 %v693
      %v1305 = vpop.f32.mrb[0].mxu0
      %v1306 = vadd.f32 0.0, %v1305
      %v1307 = vpop.f32.mrb[0].mxu0
      %v1308 = vadd.f32 0.0, %v1307
      %v1309 = vpop.f32.mrb[0].mxu0
      %v1310 = vadd.f32 0.0, %v1309
      %v1311 = vpop.f32.mrb[0].mxu0
      %v1312 = vadd.f32 0.0, %v1311
      %1313 = vmatprep.mubr.bf16.mxu0 %v699
      %1314 = vmatmul.mubr.bf16.gmra.mrb[0].mxu0 %v698
      %v1315 = vpop.f32.mrb[0].mxu0
      %v1316 = vadd.f32 0.0, %v1315
      %v1317 = vpop.f32.mrb[0].mxu0
      %v1318 = vadd.f32 0.0, %v1317
      %v1319 = vpop.f32.mrb[0].mxu0
      %v1320 = vadd.f32 0.0, %v1319
      %v1321 = vpop.f32.mrb[0].mxu0
      %v1322 = vadd.f32 0.0, %v1321
      %1323 = vmatprep.mubr.bf16.mxu0 %v704
      %1324 = vmatmul.mubr.bf16.gmra.mrb[0].mxu0 %v703
      %v1325 = vpop.f32.mrb[0].mxu0
      %v1326 = vadd.f32 0.0, %v1325
      %v1327 = vpop.f32.mrb[0].mxu0
      %v1328 = vadd.f32 0.0, %v1327
      %v1329 = vpop.f32.mrb[0].mxu0
      %v1330 = vadd.f32 0.0, %v1329
      %v1331 = vpop.f32.mrb[0].mxu0
      %v1332 = vadd.f32 0.0, %v1331
      %1333 = vmatprep.mubr.bf16.mxu0 %v709
      %1334 = vmatmul.mubr.bf16.gmra.mrb[0].mxu0 %v708
      %v1335 = vpop.f32.mrb[0].mxu0
      %v1336 = vadd.f32 0.0, %v1335
      %v1337 = vpop.f32.mrb[0].mxu0
      %v1338 = vadd.f32 0.0, %v1337
      %v1339 = vpop.f32.mrb[0].mxu0
      %v1340 = vadd.f32 0.0, %v1339
      %v1341 = vpop.f32.mrb[0].mxu0
      %v1342 = vadd.f32 0.0, %v1341
      %1343 = vmatprep.mubr.bf16.mxu0 %v714
      %1344 = vmatmul.mubr.bf16.gmra.mrb[0].mxu0 %v713
      %v1345 = vpop.f32.mrb[0].mxu0
      %v1346 = vadd.f32 0.0, %v1345
      %v1347 = vpop.f32.mrb[0].mxu0
      %v1348 = vadd.f32 0.0, %v1347
      %v1349 = vpop.f32.mrb[0].mxu0
      %v1350 = vadd.f32 0.0, %v1349
      %v1351 = vpop.f32.mrb[0].mxu0
      %v1352 = vadd.f32 0.0, %v1351
      %1353 = vmatprep.mubr.bf16.mxu0 %v719
      %1354 = vmatmul.mubr.bf16.gmra.mrb[0].mxu0 %v718
      %v1355 = vpop.f32.mrb[0].mxu0
      %v1356 = vadd.f32 0.0, %v1355
      %v1357 = vpop.f32.mrb[0].mxu0
      %v1358 = vadd.f32 0.0, %v1357
      %v1359 = vpop.f32.mrb[0].mxu0
      %v1360 = vadd.f32 0.0, %v1359
      %v1361 = vpop.f32.mrb[0].mxu0
      %v1362 = vadd.f32 0.0, %v1361
      %1363 = vmatprep.mubr.bf16.mxu0 %v724
      %1364 = vmatmul.mubr.bf16.gmra.mrb[0].mxu0 %v723
      %v1365 = vpop.f32.mrb[0].mxu0
      %v1366 = vadd.f32 0.0, %v1365
      %v1367 = vpop.f32.mrb[0].mxu0
      %v1368 = vadd.f32 0.0, %v1367
      %v1369 = vpop.f32.mrb[0].mxu0
      %v1370 = vadd.f32 0.0, %v1369
      %v1371 = vpop.f32.mrb[0].mxu0
      %v1372 = vadd.f32 0.0, %v1371
      %1373 = vmatprep.mubr.bf16.mxu0 %v729
      %1374 = vmatmul.mubr.bf16.gmra.mrb[0].mxu0 %v728
      %v1375 = vpop.f32.mrb[0].mxu0
      %v1376 = vadd.f32 0.0, %v1375
      %v1377 = vpop.f32.mrb[0].mxu0
      %v1378 = vadd.f32 0.0, %v1377
      %v1379 = vpop.f32.mrb[0].mxu0
      %v1380 = vadd.f32 0.0, %v1379
      %v1381 = vpop.f32.mrb[0].mxu0
      %v1382 = vadd.f32 0.0, %v1381
      %1383 = vmatprep.mubr.bf16.mxu0 %v734
      %1384 = vmatmul.mubr.bf16.gmra.mrb[0].mxu0 %v733
      %v1385 = vpop.f32.mrb[0].mxu0
      %v1386 = vadd.f32 0.0, %v1385
      %v1387 = vpop.f32.mrb[0].mxu0
      %v1388 = vadd.f32 0.0, %v1387
      %v1389 = vpop.f32.mrb[0].mxu0
      %v1390 = vadd.f32 0.0, %v1389
      %v1391 = vpop.f32.mrb[0].mxu0
      %v1392 = vadd.f32 0.0, %v1391
      %1393 = vmatprep.mubr.bf16.mxu0 %v739
      %1394 = vmatmul.mubr.bf16.gmra.mrb[0].mxu0 %v738
      %v1395 = vpop.f32.mrb[0].mxu0
      %v1396 = vadd.f32 0.0, %v1395
      %v1397 = vpop.f32.mrb[0].mxu0
      %v1398 = vadd.f32 0.0, %v1397
      %v1399 = vpop.f32.mrb[0].mxu0
      %v1400 = vadd.f32 0.0, %v1399
      %v1401 = vpop.f32.mrb[0].mxu0
      %v1402 = vadd.f32 0.0, %v1401
      %1403 = vmatprep.mubr.bf16.mxu0 %v744
      %1404 = vmatmul.mubr.bf16.gmra.mrb[0].mxu0 %v743
      %v1405 = vpop.f32.mrb[0].mxu0
      %v1406 = vadd.f32 0.0, %v1405
      %v1407 = vpop.f32.mrb[0].mxu0
      %v1408 = vadd.f32 0.0, %v1407
      %v1409 = vpop.f32.mrb[0].mxu0
      %v1410 = vadd.f32 0.0, %v1409
      %v1411 = vpop.f32.mrb[0].mxu0
      %v1412 = vadd.f32 0.0, %v1411
      %1413 = vdwg.mxu0
      %1414 = vmatprep.subr.bf16.mxu0 %v1061
      %1415 = vmatpush1.bf16.msra.mxu0 %v1060
      %1416 = vmatprep.subr.bf16.mxu0 %v1063
      %1417 = vmatpush1.bf16.msra.mxu0 %v1062
      %1418 = vmatprep.subr.bf16.mxu0 %v1065
      %1419 = vmatpush1.bf16.msra.mxu0 %v1064
      %1420 = vmatprep.subr.bf16.mxu0 %v1067
      %1421 = vmatpush1.bf16.msra.mxu0 %v1066
      %1422 = vmatprep.subr.bf16.mxu0 %v1069
      %1423 = vmatpush1.bf16.msra.mxu0 %v1068
      %1424 = vmatprep.subr.bf16.mxu0 %v1071
      %1425 = vmatpush1.bf16.msra.mxu0 %v1070
      %1426 = vmatprep.subr.bf16.mxu0 %v1073
      %1427 = vmatpush1.bf16.msra.mxu0 %v1072
      %1428 = vmatprep.subr.bf16.mxu0 %v1075
      %1429 = vmatpush1.bf16.msra.mxu0 %v1074
      %1430 = vmatprep.subr.bf16.mxu0 %v1077
      %1431 = vmatpush1.bf16.msra.mxu0 %v1076
      %1432 = vmatprep.subr.bf16.mxu0 %v1079
      %1433 = vmatpush1.bf16.msra.mxu0 %v1078
      %1434 = vmatprep.subr.bf16.mxu0 %v1081
      %1435 = vmatpush1.bf16.msra.mxu0 %v1080
      %1436 = vmatprep.subr.bf16.mxu0 %v1083
      %1437 = vmatpush1.bf16.msra.mxu0 %v1082
      %1438 = vmatprep.subr.bf16.mxu0 %v1085
      %1439 = vmatpush1.bf16.msra.mxu0 %v1084
      %1440 = vmatprep.subr.bf16.mxu0 %v1087
      %1441 = vmatpush1.bf16.msra.mxu0 %v1086
      %1442 = vmatprep.subr.bf16.mxu0 %v1089
      %1443 = vmatpush1.bf16.msra.mxu0 %v1088
      %1444 = vmatprep.subr.bf16.mxu0 %v1091
      %1445 = vmatpush1.bf16.msra.mxu0 %v1090
      %1446 = vmatprep.mubr.bf16.mxu0 %v671
      %1447 = vmatmul.mubr.bf16.gmra.mrb[0].mxu0 %v670
      %v1448 = vpop.f32.mrb[0].mxu0
      %v1449 = vadd.f32 %v1256, %v1448
      %v1450 = vpop.f32.mrb[0].mxu0
      %v1451 = vadd.f32 %v1258, %v1450
      %v1452 = vpop.f32.mrb[0].mxu0
      %v1453 = vadd.f32 %v1260, %v1452
      %v1454 = vpop.f32.mrb[0].mxu0
      %v1455 = vadd.f32 %v1262, %v1454
      %1456 = vmatprep.mubr.bf16.mxu0 %v676
      %1457 = vmatmul.mubr.bf16.gmra.mrb[0].mxu0 %v675
      %v1458 = vpop.f32.mrb[0].mxu0
      %v1459 = vadd.f32 %v1266, %v1458
      %v1460 = vpop.f32.mrb[0].mxu0
      %v1461 = vadd.f32 %v1268, %v1460
      %v1462 = vpop.f32.mrb[0].mxu0
      %v1463 = vadd.f32 %v1270, %v1462
      %v1464 = vpop.f32.mrb[0].mxu0
      %v1465 = vadd.f32 %v1272, %v1464
      %1466 = vmatprep.mubr.bf16.mxu0 %v681
      %1467 = vmatmul.mubr.bf16.gmra.mrb[0].mxu0 %v680
      %v1468 = vpop.f32.mrb[0].mxu0
      %v1469 = vadd.f32 %v1276, %v1468
      %v1470 = vpop.f32.mrb[0].mxu0
      %v1471 = vadd.f32 %v1278, %v1470
      %v1472 = vpop.f32.mrb[0].mxu0
      %v1473 = vadd.f32 %v1280, %v1472
      %v1474 = vpop.f32.mrb[0].mxu0
      %v1475 = vadd.f32 %v1282, %v1474
      %1476 = vmatprep.mubr.bf16.mxu0 %v686
      %1477 = vmatmul.mubr.bf16.gmra.mrb[0].mxu0 %v685
      %v1478 = vpop.f32.mrb[0].mxu0
      %v1479 = vadd.f32 %v1286, %v1478
      %v1480 = vpop.f32.mrb[0].mxu0
      %v1481 = vadd.f32 %v1288, %v1480
      %v1482 = vpop.f32.mrb[0].mxu0
      %v1483 = vadd.f32 %v1290, %v1482
      %v1484 = vpop.f32.mrb[0].mxu0
      %v1485 = vadd.f32 %v1292, %v1484
      %1486 = vmatprep.mubr.bf16.mxu0 %v691
      %1487 = vmatmul.mubr.bf16.gmra.mrb[0].mxu0 %v690
      %v1488 = vpop.f32.mrb[0].mxu0
      %v1489 = vadd.f32 %v1296, %v1488
      %v1490 = vpop.f32.mrb[0].mxu0
      %v1491 = vadd.f32 %v1298, %v1490
      %v1492 = vpop.f32.mrb[0].mxu0
      %v1493 = vadd.f32 %v1300, %v1492
      %v1494 = vpop.f32.mrb[0].mxu0
      %v1495 = vadd.f32 %v1302, %v1494
      %1496 = vmatprep.mubr.bf16.mxu0 %v696
      %1497 = vmatmul.mubr.bf16.gmra.mrb[0].mxu0 %v695
      %v1498 = vpop.f32.mrb[0].mxu0
      %v1499 = vadd.f32 %v1306, %v1498
      %v1500 = vpop.f32.mrb[0].mxu0
      %v1501 = vadd.f32 %v1308, %v1500
      %v1502 = vpop.f32.mrb[0].mxu0
      %v1503 = vadd.f32 %v1310, %v1502
      %v1504 = vpop.f32.mrb[0].mxu0
      %v1505 = vadd.f32 %v1312, %v1504
      %1506 = vmatprep.mubr.bf16.mxu0 %v701
      %1507 = vmatmul.mubr.bf16.gmra.mrb[0].mxu0 %v700
      %v1508 = vpop.f32.mrb[0].mxu0
      %v1509 = vadd.f32 %v1316, %v1508
      %v1510 = vpop.f32.mrb[0].mxu0
      %v1511 = vadd.f32 %v1318, %v1510
      %v1512 = vpop.f32.mrb[0].mxu0
      %v1513 = vadd.f32 %v1320, %v1512
      %v1514 = vpop.f32.mrb[0].mxu0
      %v1515 = vadd.f32 %v1322, %v1514
      %1516 = vmatprep.mubr.bf16.mxu0 %v706
      %1517 = vmatmul.mubr.bf16.gmra.mrb[0].mxu0 %v705
      %v1518 = vpop.f32.mrb[0].mxu0
      %v1519 = vadd.f32 %v1326, %v1518
      %v1520 = vpop.f32.mrb[0].mxu0
      %v1521 = vadd.f32 %v1328, %v1520
      %v1522 = vpop.f32.mrb[0].mxu0
      %v1523 = vadd.f32 %v1330, %v1522
      %v1524 = vpop.f32.mrb[0].mxu0
      %v1525 = vadd.f32 %v1332, %v1524
      %1526 = vmatprep.mubr.bf16.mxu0 %v711
      %1527 = vmatmul.mubr.bf16.gmra.mrb[0].mxu0 %v710
      %v1528 = vpop.f32.mrb[0].mxu0
      %v1529 = vadd.f32 %v1336, %v1528
      %v1530 = vpop.f32.mrb[0].mxu0
      %v1531 = vadd.f32 %v1338, %v1530
      %v1532 = vpop.f32.mrb[0].mxu0
      %v1533 = vadd.f32 %v1340, %v1532
      %v1534 = vpop.f32.mrb[0].mxu0
      %v1535 = vadd.f32 %v1342, %v1534
      %1536 = vmatprep.mubr.bf16.mxu0 %v716
      %1537 = vmatmul.mubr.bf16.gmra.mrb[0].mxu0 %v715
      %v1538 = vpop.f32.mrb[0].mxu0
      %v1539 = vadd.f32 %v1346, %v1538
      %v1540 = vpop.f32.mrb[0].mxu0
      %v1541 = vadd.f32 %v1348, %v1540
      %v1542 = vpop.f32.mrb[0].mxu0
      %v1543 = vadd.f32 %v1350, %v1542
      %v1544 = vpop.f32.mrb[0].mxu0
      %v1545 = vadd.f32 %v1352, %v1544
      %1546 = vmatprep.mubr.bf16.mxu0 %v721
      %1547 = vmatmul.mubr.bf16.gmra.mrb[0].mxu0 %v720
      %v1548 = vpop.f32.mrb[0].mxu0
      %v1549 = vadd.f32 %v1356, %v1548
      %v1550 = vpop.f32.mrb[0].mxu0
      %v1551 = vadd.f32 %v1358, %v1550
      %v1552 = vpop.f32.mrb[0].mxu0
      %v1553 = vadd.f32 %v1360, %v1552
      %v1554 = vpop.f32.mrb[0].mxu0
      %v1555 = vadd.f32 %v1362, %v1554
      %1556 = vmatprep.mubr.bf16.mxu0 %v726
      %1557 = vmatmul.mubr.bf16.gmra.mrb[0].mxu0 %v725
      %v1558 = vpop.f32.mrb[0].mxu0
      %v1559 = vadd.f32 %v1366, %v1558
      %v1560 = vpop.f32.mrb[0].mxu0
      %v1561 = vadd.f32 %v1368, %v1560
      %v1562 = vpop.f32.mrb[0].mxu0
      %v1563 = vadd.f32 %v1370, %v1562
      %v1564 = vpop.f32.mrb[0].mxu0
      %v1565 = vadd.f32 %v1372, %v1564
      %1566 = vmatprep.mubr.bf16.mxu0 %v731
      %1567 = vmatmul.mubr.bf16.gmra.mrb[0].mxu0 %v730
      %v1568 = vpop.f32.mrb[0].mxu0
      %v1569 = vadd.f32 %v1376, %v1568
      %v1570 = vpop.f32.mrb[0].mxu0
      %v1571 = vadd.f32 %v1378, %v1570
      %v1572 = vpop.f32.mrb[0].mxu0
      %v1573 = vadd.f32 %v1380, %v1572
      %v1574 = vpop.f32.mrb[0].mxu0
      %v1575 = vadd.f32 %v1382, %v1574
      %1576 = vmatprep.mubr.bf16.mxu0 %v736
      %1577 = vmatmul.mubr.bf16.gmra.mrb[0].mxu0 %v735
      %v1578 = vpop.f32.mrb[0].mxu0
      %v1579 = vadd.f32 %v1386, %v1578
      %v1580 = vpop.f32.mrb[0].mxu0
      %v1581 = vadd.f32 %v1388, %v1580
      %v1582 = vpop.f32.mrb[0].mxu0
      %v1583 = vadd.f32 %v1390, %v1582
      %v1584 = vpop.f32.mrb[0].mxu0
      %v1585 = vadd.f32 %v1392, %v1584
      %1586 = vmatprep.mubr.bf16.mxu0 %v741
      %1587 = vmatmul.mubr.bf16.gmra.mrb[0].mxu0 %v740
      %v1588 = vpop.f32.mrb[0].mxu0
      %v1589 = vadd.f32 %v1396, %v1588
      %v1590 = vpop.f32.mrb[0].mxu0
      %v1591 = vadd.f32 %v1398, %v1590
      %v1592 = vpop.f32.mrb[0].mxu0
      %v1593 = vadd.f32 %v1400, %v1592
      %v1594 = vpop.f32.mrb[0].mxu0
      %v1595 = vadd.f32 %v1402, %v1594
      %1596 = vmatprep.mubr.bf16.mxu0 %v746
      %1597 = vmatmul.mubr.bf16.gmra.mrb[0].mxu0 %v745
      %v1598 = vpop.f32.mrb[0].mxu0
      %v1599 = vadd.f32 %v1406, %v1598
      %v1600 = vpop.f32.mrb[0].mxu0
      %v1601 = vadd.f32 %v1408, %v1600
      %v1602 = vpop.f32.mrb[0].mxu0
      %v1603 = vadd.f32 %v1410, %v1602
      %v1604 = vpop.f32.mrb[0].mxu0
      %v1605 = vadd.f32 %v1412, %v1604
      %1606 = vdwg.mxu0
      %1607 = vmatprep.subr.bf16.mxu0 %v1093
      %1608 = vmatpush1.bf16.msra.mxu0 %v1092
      %1609 = vmatprep.subr.bf16.mxu0 %v1095
      %1610 = vmatpush1.bf16.msra.mxu0 %v1094
      %1611 = vmatprep.subr.bf16.mxu0 %v1097
      %1612 = vmatpush1.bf16.msra.mxu0 %v1096
      %1613 = vmatprep.subr.bf16.mxu0 %v1099
      %1614 = vmatpush1.bf16.msra.mxu0 %v1098
      %1615 = vmatprep.subr.bf16.mxu0 0
      %1616 = vmatpush1.bf16.msra.mxu0 0
      %1617 = vmatprep.subr.bf16.mxu0 0
      %1618 = vmatpush1.bf16.msra.mxu0 0
      %1619 = vmatprep.subr.bf16.mxu0 0
      %1620 = vmatpush1.bf16.msra.mxu0 0
      %1621 = vmatprep.subr.bf16.mxu0 0
      %1622 = vmatpush1.bf16.msra.mxu0 0
      %1623 = vmatprep.subr.bf16.mxu0 0
      %1624 = vmatpush1.bf16.msra.mxu0 0
      %1625 = vmatprep.subr.bf16.mxu0 0
      %1626 = vmatpush1.bf16.msra.mxu0 0
      %1627 = vmatprep.subr.bf16.mxu0 0
      %1628 = vmatpush1.bf16.msra.mxu0 0
      %1629 = vmatprep.subr.bf16.mxu0 0
      %1630 = vmatpush1.bf16.msra.mxu0 0
      %1631 = vmatprep.subr.bf16.mxu0 0
      %1632 = vmatpush1.bf16.msra.mxu0 0
      %1633 = vmatprep.subr.bf16.mxu0 0
      %1634 = vmatpush1.bf16.msra.mxu0 0
      %1635 = vmatprep.subr.bf16.mxu0 0
      %1636 = vmatpush1.bf16.msra.mxu0 0
      %1637 = vmatprep.subr.bf16.mxu0 0
      %1638 = vmatpush1.bf16.msra.mxu0 0
      %1639 = vmatprep.mubr.bf16.mxu0 0
      %1640 = vmatmul.mubr.bf16.gmra.mrb[0].mxu0 %v1174
      %v1641 = vpop.f32.mrb[0].mxu0
      %v1642 = vadd.f32 %v1449, %v1641
      %v1643 = vpop.f32.mrb[0].mxu0
      %v1644 = vadd.f32 %v1451, %v1643
      %v1645 = vpop.f32.mrb[0].mxu0
      %v1646 = vadd.f32 %v1453, %v1645
      %v1647 = vpop.f32.mrb[0].mxu0
      %v1648 = vadd.f32 %v1455, %v1647
      %1649 = vmatprep.mubr.bf16.mxu0 0
      %1650 = vmatmul.mubr.bf16.gmra.mrb[0].mxu0 %v1177
      %v1651 = vpop.f32.mrb[0].mxu0
      %v1652 = vadd.f32 %v1459, %v1651
      %v1653 = vpop.f32.mrb[0].mxu0
      %v1654 = vadd.f32 %v1461, %v1653
      %v1655 = vpop.f32.mrb[0].mxu0
      %v1656 = vadd.f32 %v1463, %v1655
      %v1657 = vpop.f32.mrb[0].mxu0
      %v1658 = vadd.f32 %v1465, %v1657
      %1659 = vmatprep.mubr.bf16.mxu0 0
      %1660 = vmatmul.mubr.bf16.gmra.mrb[0].mxu0 %v1180
      %v1661 = vpop.f32.mrb[0].mxu0
      %v1662 = vadd.f32 %v1469, %v1661
      %v1663 = vpop.f32.mrb[0].mxu0
      %v1664 = vadd.f32 %v1471, %v1663
      %v1665 = vpop.f32.mrb[0].mxu0
      %v1666 = vadd.f32 %v1473, %v1665
      %v1667 = vpop.f32.mrb[0].mxu0
      %v1668 = vadd.f32 %v1475, %v1667
      %1669 = vmatprep.mubr.bf16.mxu0 0
      %1670 = vmatmul.mubr.bf16.gmra.mrb[0].mxu0 %v1183
      %v1671 = vpop.f32.mrb[0].mxu0
      %v1672 = vadd.f32 %v1479, %v1671
      %v1673 = vpop.f32.mrb[0].mxu0
      %v1674 = vadd.f32 %v1481, %v1673
      %v1675 = vpop.f32.mrb[0].mxu0
      %v1676 = vadd.f32 %v1483, %v1675
      %v1677 = vpop.f32.mrb[0].mxu0
      %v1678 = vadd.f32 %v1485, %v1677
      %1679 = vmatprep.mubr.bf16.mxu0 0
      %1680 = vmatmul.mubr.bf16.gmra.mrb[0].mxu0 %v1186
      %v1681 = vpop.f32.mrb[0].mxu0
      %v1682 = vadd.f32 %v1489, %v1681
      %v1683 = vpop.f32.mrb[0].mxu0
      %v1684 = vadd.f32 %v1491, %v1683
      %v1685 = vpop.f32.mrb[0].mxu0
      %v1686 = vadd.f32 %v1493, %v1685
      %v1687 = vpop.f32.mrb[0].mxu0
      %v1688 = vadd.f32 %v1495, %v1687
      %1689 = vmatprep.mubr.bf16.mxu0 0
      %1690 = vmatmul.mubr.bf16.gmra.mrb[0].mxu0 %v1189
      %v1691 = vpop.f32.mrb[0].mxu0
      %v1692 = vadd.f32 %v1499, %v1691
      %v1693 = vpop.f32.mrb[0].mxu0
      %v1694 = vadd.f32 %v1501, %v1693
      %v1695 = vpop.f32.mrb[0].mxu0
      %v1696 = vadd.f32 %v1503, %v1695
      %v1697 = vpop.f32.mrb[0].mxu0
      %v1698 = vadd.f32 %v1505, %v1697
      %1699 = vmatprep.mubr.bf16.mxu0 0
      %1700 = vmatmul.mubr.bf16.gmra.mrb[0].mxu0 %v1192
      %v1701 = vpop.f32.mrb[0].mxu0
      %v1702 = vadd.f32 %v1509, %v1701
      %v1703 = vpop.f32.mrb[0].mxu0
      %v1704 = vadd.f32 %v1511, %v1703
      %v1705 = vpop.f32.mrb[0].mxu0
      %v1706 = vadd.f32 %v1513, %v1705
      %v1707 = vpop.f32.mrb[0].mxu0
      %v1708 = vadd.f32 %v1515, %v1707
      %1709 = vmatprep.mubr.bf16.mxu0 0
      %1710 = vmatmul.mubr.bf16.gmra.mrb[0].mxu0 %v1195
      %v1711 = vpop.f32.mrb[0].mxu0
      %v1712 = vadd.f32 %v1519, %v1711
      %v1713 = vpop.f32.mrb[0].mxu0
      %v1714 = vadd.f32 %v1521, %v1713
      %v1715 = vpop.f32.mrb[0].mxu0
      %v1716 = vadd.f32 %v1523, %v1715
      %v1717 = vpop.f32.mrb[0].mxu0
      %v1718 = vadd.f32 %v1525, %v1717
      %1719 = vmatprep.mubr.bf16.mxu0 0
      %1720 = vmatmul.mubr.bf16.gmra.mrb[0].mxu0 %v1198
      %v1721 = vpop.f32.mrb[0].mxu0
      %v1722 = vadd.f32 %v1529, %v1721
      %v1723 = vpop.f32.mrb[0].mxu0
      %v1724 = vadd.f32 %v1531, %v1723
      %v1725 = vpop.f32.mrb[0].mxu0
      %v1726 = vadd.f32 %v1533, %v1725
      %v1727 = vpop.f32.mrb[0].mxu0
      %v1728 = vadd.f32 %v1535, %v1727
      %1729 = vmatprep.mubr.bf16.mxu0 0
      %1730 = vmatmul.mubr.bf16.gmra.mrb[0].mxu0 %v1201
      %v1731 = vpop.f32.mrb[0].mxu0
      %v1732 = vadd.f32 %v1539, %v1731
      %v1733 = vpop.f32.mrb[0].mxu0
      %v1734 = vadd.f32 %v1541, %v1733
      %v1735 = vpop.f32.mrb[0].mxu0
      %v1736 = vadd.f32 %v1543, %v1735
      %v1737 = vpop.f32.mrb[0].mxu0
      %v1738 = vadd.f32 %v1545, %v1737
      %1739 = vmatprep.mubr.bf16.mxu0 0
      %1740 = vmatmul.mubr.bf16.gmra.mrb[0].mxu0 %v1204
      %v1741 = vpop.f32.mrb[0].mxu0
      %v1742 = vadd.f32 %v1549, %v1741
      %v1743 = vpop.f32.mrb[0].mxu0
      %v1744 = vadd.f32 %v1551, %v1743
      %v1745 = vpop.f32.mrb[0].mxu0
      %v1746 = vadd.f32 %v1553, %v1745
      %v1747 = vpop.f32.mrb[0].mxu0
      %v1748 = vadd.f32 %v1555, %v1747
      %1749 = vmatprep.mubr.bf16.mxu0 0
      %1750 = vmatmul.mubr.bf16.gmra.mrb[0].mxu0 %v1207
      %v1751 = vpop.f32.mrb[0].mxu0
      %v1752 = vadd.f32 %v1559, %v1751
      %v1753 = vpop.f32.mrb[0].mxu0
      %v1754 = vadd.f32 %v1561, %v1753
      %v1755 = vpop.f32.mrb[0].mxu0
      %v1756 = vadd.f32 %v1563, %v1755
      %v1757 = vpop.f32.mrb[0].mxu0
      %v1758 = vadd.f32 %v1565, %v1757
      %1759 = vmatprep.mubr.bf16.mxu0 0
      %1760 = vmatmul.mubr.bf16.gmra.mrb[0].mxu0 %v1210
      %v1761 = vpop.f32.mrb[0].mxu0
      %v1762 = vadd.f32 %v1569, %v1761
      %v1763 = vpop.f32.mrb[0].mxu0
      %v1764 = vadd.f32 %v1571, %v1763
      %v1765 = vpop.f32.mrb[0].mxu0
      %v1766 = vadd.f32 %v1573, %v1765
      %v1767 = vpop.f32.mrb[0].mxu0
      %v1768 = vadd.f32 %v1575, %v1767
      %1769 = vmatprep.mubr.bf16.mxu0 0
      %1770 = vmatmul.mubr.bf16.gmra.mrb[0].mxu0 %v1213
      %v1771 = vpop.f32.mrb[0].mxu0
      %v1772 = vadd.f32 %v1579, %v1771
      %v1773 = vpop.f32.mrb[0].mxu0
      %v1774 = vadd.f32 %v1581, %v1773
      %v1775 = vpop.f32.mrb[0].mxu0
      %v1776 = vadd.f32 %v1583, %v1775
      %v1777 = vpop.f32.mrb[0].mxu0
      %v1778 = vadd.f32 %v1585, %v1777
      %1779 = vmatprep.mubr.bf16.mxu0 0
      %1780 = vmatmul.mubr.bf16.gmra.mrb[0].mxu0 %v1216
      %v1781 = vpop.f32.mrb[0].mxu0
      %v1782 = vadd.f32 %v1589, %v1781
      %v1783 = vpop.f32.mrb[0].mxu0
      %v1784 = vadd.f32 %v1591, %v1783
      %v1785 = vpop.f32.mrb[0].mxu0
      %v1786 = vadd.f32 %v1593, %v1785
      %v1787 = vpop.f32.mrb[0].mxu0
      %v1788 = vadd.f32 %v1595, %v1787
      %1789 = vmatprep.mubr.bf16.mxu0 0
      %1790 = vmatmul.mubr.bf16.gmra.mrb[0].mxu0 %v1219
      %v1791 = vpop.f32.mrb[0].mxu0
      %v1792 = vadd.f32 %v1599, %v1791
      %v1793 = vpop.f32.mrb[0].mxu0
      %v1794 = vadd.f32 %v1601, %v1793
      %v1795 = vpop.f32.mrb[0].mxu0
      %v1796 = vadd.f32 %v1603, %v1795
      %v1797 = vpop.f32.mrb[0].mxu0
      %v1798 = vadd.f32 %v1605, %v1797
      %1799 = vdwg.mxu0
      %1800 = vst [vmem:[#allocation2] sm:$0xff] %v1642
      %1801 = vst [vmem:[#allocation2 + $0x8] sm:$0xff] %v1644
      %1802 = vst [vmem:[#allocation2 + $0x10] sm:$0xff] %v1646
      %1803 = vst [vmem:[#allocation2 + $0x18] sm:$0xff] %v1648
      %1804 = vst [vmem:[#allocation2 + $0x20] sm:$0xff] %v1652
      %1805 = vst [vmem:[#allocation2 + $0x28] sm:$0xff] %v1654
      %1806 = vst [vmem:[#allocation2 + $0x30] sm:$0xff] %v1656
      %1807 = vst [vmem:[#allocation2 + $0x38] sm:$0xff] %v1658
      %1808 = vst [vmem:[#allocation2 + $0x40] sm:$0xff] %v1662
      %1809 = vst [vmem:[#allocation2 + $0x48] sm:$0xff] %v1664
      %1810 = vst [vmem:[#allocation2 + $0x50] sm:$0xff] %v1666
      %1811 = vst [vmem:[#allocation2 + $0x58] sm:$0xff] %v1668
      %1812 = vst [vmem:[#allocation2 + $0x60] sm:$0xff] %v1672
      %1813 = vst [vmem:[#allocation2 + $0x68] sm:$0xff] %v1674
      %1814 = vst [vmem:[#allocation2 + $0x70] sm:$0xff] %v1676
      %1815 = vst [vmem:[#allocation2 + $0x78] sm:$0xff] %v1678
      %1816 = vst [vmem:[#allocation2 + $0x80] sm:$0xff] %v1682
      %1817 = vst [vmem:[#allocation2 + $0x88] sm:$0xff] %v1684
      %1818 = vst [vmem:[#allocation2 + $0x90] sm:$0xff] %v1686
      %1819 = vst [vmem:[#allocation2 + $0x98] sm:$0xff] %v1688
      %1820 = vst [vmem:[#allocation2 + $0xa0] sm:$0xff] %v1692
      %1821 = vst [vmem:[#allocation2 + $0xa8] sm:$0xff] %v1694
      %1822 = vst [vmem:[#allocation2 + $0xb0] sm:$0xff] %v1696
      %1823 = vst [vmem:[#allocation2 + $0xb8] sm:$0xff] %v1698
      %1824 = vst [vmem:[#allocation2 + $0xc0] sm:$0xff] %v1702
      %1825 = vst [vmem:[#allocation2 + $0xc8] sm:$0xff] %v1704
      %1826 = vst [vmem:[#allocation2 + $0xd0] sm:$0xff] %v1706
      %1827 = vst [vmem:[#allocation2 + $0xd8] sm:$0xff] %v1708
      %1828 = vst [vmem:[#allocation2 + $0xe0] sm:$0xff] %v1712
      %1829 = vst [vmem:[#allocation2 + $0xe8] sm:$0xff] %v1714
      %1830 = vst [vmem:[#allocation2 + $0xf0] sm:$0xff] %v1716
      %1831 = vst [vmem:[#allocation2 + $0xf8] sm:$0xff] %v1718
      %1832 = vst [vmem:[#allocation2 + $0x100] sm:$0xff] %v1722
      %1833 = vst [vmem:[#allocation2 + $0x108] sm:$0xff] %v1724
      %1834 = vst [vmem:[#allocation2 + $0x110] sm:$0xff] %v1726
      %1835 = vst [vmem:[#allocation2 + $0x118] sm:$0xff] %v1728
      %1836 = vst [vmem:[#allocation2 + $0x120] sm:$0xff] %v1732
      %1837 = vst [vmem:[#allocation2 + $0x128] sm:$0xff] %v1734
      %1838 = vst [vmem:[#allocation2 + $0x130] sm:$0xff] %v1736
      %1839 = vst [vmem:[#allocation2 + $0x138] sm:$0xff] %v1738
      %1840 = vst [vmem:[#allocation2 + $0x140] sm:$0xff] %v1742
      %1841 = vst [vmem:[#allocation2 + $0x148] sm:$0xff] %v1744
      %1842 = vst [vmem:[#allocation2 + $0x150] sm:$0xff] %v1746
      %1843 = vst [vmem:[#allocation2 + $0x158] sm:$0xff] %v1748
      %1844 = vst [vmem:[#allocation2 + $0x160] sm:$0xff] %v1752
      %1845 = vst [vmem:[#allocation2 + $0x168] sm:$0xff] %v1754
      %1846 = vst [vmem:[#allocation2 + $0x170] sm:$0xff] %v1756
      %1847 = vst [vmem:[#allocation2 + $0x178] sm:$0xff] %v1758
      %1848 = vst [vmem:[#allocation2 + $0x180] sm:$0xff] %v1762
      %1849 = vst [vmem:[#allocation2 + $0x188] sm:$0xff] %v1764
      %1850 = vst [vmem:[#allocation2 + $0x190] sm:$0xff] %v1766
      %1851 = vst [vmem:[#allocation2 + $0x198] sm:$0xff] %v1768
      %1852 = vst [vmem:[#allocation2 + $0x1a0] sm:$0xff] %v1772
      %1853 = vst [vmem:[#allocation2 + $0x1a8] sm:$0xff] %v1774
      %1854 = vst [vmem:[#allocation2 + $0x1b0] sm:$0xff] %v1776
      %1855 = vst [vmem:[#allocation2 + $0x1b8] sm:$0xff] %v1778
      %1856 = vst [vmem:[#allocation2 + $0x1c0] sm:$0xff] %v1782
      %1857 = vst [vmem:[#allocation2 + $0x1c8] sm:$0xff] %v1784
      %1858 = vst [vmem:[#allocation2 + $0x1d0] sm:$0xff] %v1786
      %1859 = vst [vmem:[#allocation2 + $0x1d8] sm:$0xff] %v1788
      %1860 = vst [vmem:[#allocation2 + $0x1e0] sm:$0xff] %v1792
      %1861 = vst [vmem:[#allocation2 + $0x1e8] sm:$0xff] %v1794
      %1862 = vst [vmem:[#allocation2 + $0x1f0] sm:$0xff] %v1796
      %1863 = vst [vmem:[#allocation2 + $0x1f8] sm:$0xff] %v1798
      %s1864 = sld [smem:[#allocation3]]
      %v1865 = vld [vmem:[%s3] sm:$0x3]
      %v1866 = vld [vmem:[#allocation2] sm:$0xff]
      %v1867 = vld [vmem:[#allocation2 + $0x8] sm:$0xff]
      %v1868 = vld [vmem:[#allocation2 + $0x10] sm:$0xff]
      %v1869 = vld [vmem:[#allocation2 + $0x18] sm:$0xff]
      %v1870 = vld [vmem:[#allocation2 + $0x20] sm:$0xff]
      %v1871 = vld [vmem:[#allocation2 + $0x28] sm:$0xff]
      %v1872 = vld [vmem:[#allocation2 + $0x30] sm:$0xff]
      %v1873 = vld [vmem:[#allocation2 + $0x38] sm:$0xff]
      %v1874 = vld [vmem:[#allocation2 + $0x40] sm:$0xff]
      %v1875 = vld [vmem:[#allocation2 + $0x48] sm:$0xff]
      %v1876 = vld [vmem:[#allocation2 + $0x50] sm:$0xff]
      %v1877 = vld [vmem:[#allocation2 + $0x58] sm:$0xff]
      %v1878 = vld [vmem:[#allocation2 + $0x60] sm:$0xff]
      %v1879 = vld [vmem:[#allocation2 + $0x68] sm:$0xff]
      %v1880 = vld [vmem:[#allocation2 + $0x70] sm:$0xff]
      %v1881 = vld [vmem:[#allocation2 + $0x78] sm:$0xff]
      %v1882 = vld [vmem:[#allocation2 + $0x80] sm:$0xff]
      %v1883 = vld [vmem:[#allocation2 + $0x88] sm:$0xff]
      %v1884 = vld [vmem:[#allocation2 + $0x90] sm:$0xff]
      %v1885 = vld [vmem:[#allocation2 + $0x98] sm:$0xff]
      %v1886 = vld [vmem:[#allocation2 + $0xa0] sm:$0xff]
      %v1887 = vld [vmem:[#allocation2 + $0xa8] sm:$0xff]
      %v1888 = vld [vmem:[#allocation2 + $0xb0] sm:$0xff]
      %v1889 = vld [vmem:[#allocation2 + $0xb8] sm:$0xff]
      %v1890 = vld [vmem:[#allocation2 + $0xc0] sm:$0xff]
      %v1891 = vld [vmem:[#allocation2 + $0xc8] sm:$0xff]
      %v1892 = vld [vmem:[#allocation2 + $0xd0] sm:$0xff]
      %v1893 = vld [vmem:[#allocation2 + $0xd8] sm:$0xff]
      %v1894 = vld [vmem:[#allocation2 + $0xe0] sm:$0xff]
      %v1895 = vld [vmem:[#allocation2 + $0xe8] sm:$0xff]
      %v1896 = vld [vmem:[#allocation2 + $0xf0] sm:$0xff]
      %v1897 = vld [vmem:[#allocation2 + $0xf8] sm:$0xff]
      %v1899 = vlaneseq
      %v1900 = vshrl.u32 %v1899, 7
      %v1901 = vsub.s32 0, %v1900
      %v1902 = vrot.slane %v1865, %v1901
      %v1903 = vlaneseq
      %v1904 = vshrl.u32 %v1903, 7
      %v1905 = vsub.s32 1, %v1904
      %v1906 = vrot.slane %v1865, %v1905
      %v1909 = vadd.f32 %v1866, %v1902
      %v1910 = vadd.f32 %v1867, %v1906
      %v1911 = vadd.f32 %v1868, %v1902
      %v1912 = vadd.f32 %v1869, %v1906
      %v1913 = vadd.f32 %v1870, %v1902
      %v1914 = vadd.f32 %v1871, %v1906
      %v1915 = vadd.f32 %v1872, %v1902
      %v1916 = vadd.f32 %v1873, %v1906
      %v1917 = vadd.f32 %v1874, %v1902
      %v1918 = vadd.f32 %v1875, %v1906
      %v1919 = vadd.f32 %v1876, %v1902
      %v1920 = vadd.f32 %v1877, %v1906
      %v1921 = vadd.f32 %v1878, %v1902
      %v1922 = vadd.f32 %v1879, %v1906
      %v1923 = vadd.f32 %v1880, %v1902
      %v1924 = vadd.f32 %v1881, %v1906
      %v1925 = vadd.f32 %v1882, %v1902
      %v1926 = vadd.f32 %v1883, %v1906
      %v1927 = vadd.f32 %v1884, %v1902
      %v1928 = vadd.f32 %v1885, %v1906
      %v1929 = vadd.f32 %v1886, %v1902
      %v1930 = vadd.f32 %v1887, %v1906
      %v1931 = vadd.f32 %v1888, %v1902
      %v1932 = vadd.f32 %v1889, %v1906
      %v1933 = vadd.f32 %v1890, %v1902
      %v1934 = vadd.f32 %v1891, %v1906
      %v1935 = vadd.f32 %v1892, %v1902
      %v1936 = vadd.f32 %v1893, %v1906
      %v1937 = vadd.f32 %v1894, %v1902
      %v1938 = vadd.f32 %v1895, %v1906
      %v1939 = vadd.f32 %v1896, %v1902
      %v1940 = vadd.f32 %v1897, %v1906
      %vm1941 = vcmp.gt.f32.partialorder %v1909, 0.0
      %vm1942 = vcmp.gt.f32.partialorder %v1910, 0.0
      %vm1943 = vcmp.gt.f32.partialorder %v1911, 0.0
      %vm1944 = vcmp.gt.f32.partialorder %v1912, 0.0
      %vm1945 = vcmp.gt.f32.partialorder %v1913, 0.0
      %vm1946 = vcmp.gt.f32.partialorder %v1914, 0.0
      %vm1947 = vcmp.gt.f32.partialorder %v1915, 0.0
      %vm1948 = vcmp.gt.f32.partialorder %v1916, 0.0
      %vm1949 = vcmp.gt.f32.partialorder %v1917, 0.0
      %vm1950 = vcmp.gt.f32.partialorder %v1918, 0.0
      %vm1951 = vcmp.gt.f32.partialorder %v1919, 0.0
      %vm1952 = vcmp.gt.f32.partialorder %v1920, 0.0
      %vm1953 = vcmp.gt.f32.partialorder %v1921, 0.0
      %vm1954 = vcmp.gt.f32.partialorder %v1922, 0.0
      %vm1955 = vcmp.gt.f32.partialorder %v1923, 0.0
      %vm1956 = vcmp.gt.f32.partialorder %v1924, 0.0
      %vm1957 = vcmp.gt.f32.partialorder %v1925, 0.0
      %vm1958 = vcmp.gt.f32.partialorder %v1926, 0.0
      %vm1959 = vcmp.gt.f32.partialorder %v1927, 0.0
      %vm1960 = vcmp.gt.f32.partialorder %v1928, 0.0
      %vm1961 = vcmp.gt.f32.partialorder %v1929, 0.0
      %vm1962 = vcmp.gt.f32.partialorder %v1930, 0.0
      %vm1963 = vcmp.gt.f32.partialorder %v1931, 0.0
      %vm1964 = vcmp.gt.f32.partialorder %v1932, 0.0
      %vm1965 = vcmp.gt.f32.partialorder %v1933, 0.0
      %vm1966 = vcmp.gt.f32.partialorder %v1934, 0.0
      %vm1967 = vcmp.gt.f32.partialorder %v1935, 0.0
      %vm1968 = vcmp.gt.f32.partialorder %v1936, 0.0
      %vm1969 = vcmp.gt.f32.partialorder %v1937, 0.0
      %vm1970 = vcmp.gt.f32.partialorder %v1938, 0.0
      %vm1971 = vcmp.gt.f32.partialorder %v1939, 0.0
      %vm1972 = vcmp.gt.f32.partialorder %v1940, 0.0
      %v1973 = vstv %s1864
      %v1974 = vmul.f32 %v1973, %v1909
      %v1975 = vmul.f32 %v1973, %v1910
      %v1976 = vmul.f32 %v1973, %v1911
      %v1977 = vmul.f32 %v1973, %v1912
      %v1978 = vmul.f32 %v1973, %v1913
      %v1979 = vmul.f32 %v1973, %v1914
      %v1980 = vmul.f32 %v1973, %v1915
      %v1981 = vmul.f32 %v1973, %v1916
      %v1982 = vmul.f32 %v1973, %v1917
      %v1983 = vmul.f32 %v1973, %v1918
      %v1984 = vmul.f32 %v1973, %v1919
      %v1985 = vmul.f32 %v1973, %v1920
      %v1986 = vmul.f32 %v1973, %v1921
      %v1987 = vmul.f32 %v1973, %v1922
      %v1988 = vmul.f32 %v1973, %v1923
      %v1989 = vmul.f32 %v1973, %v1924
      %v1990 = vmul.f32 %v1973, %v1925
      %v1991 = vmul.f32 %v1973, %v1926
      %v1992 = vmul.f32 %v1973, %v1927
      %v1993 = vmul.f32 %v1973, %v1928
      %v1994 = vmul.f32 %v1973, %v1929
      %v1995 = vmul.f32 %v1973, %v1930
      %v1996 = vmul.f32 %v1973, %v1931
      %v1997 = vmul.f32 %v1973, %v1932
      %v1998 = vmul.f32 %v1973, %v1933
      %v1999 = vmul.f32 %v1973, %v1934
      %v2000 = vmul.f32 %v1973, %v1935
      %v2001 = vmul.f32 %v1973, %v1936
      %v2002 = vmul.f32 %v1973, %v1937
      %v2003 = vmul.f32 %v1973, %v1938
      %v2004 = vmul.f32 %v1973, %v1939
      %v2005 = vmul.f32 %v1973, %v1940
      %v2006 = vsel %vm1941, %v1909, %v1974
      %v2007 = vsel %vm1942, %v1910, %v1975
      %v2008 = vsel %vm1943, %v1911, %v1976
      %v2009 = vsel %vm1944, %v1912, %v1977
      %v2010 = vsel %vm1945, %v1913, %v1978
      %v2011 = vsel %vm1946, %v1914, %v1979
      %v2012 = vsel %vm1947, %v1915, %v1980
      %v2013 = vsel %vm1948, %v1916, %v1981
      %v2014 = vsel %vm1949, %v1917, %v1982
      %v2015 = vsel %vm1950, %v1918, %v1983
      %v2016 = vsel %vm1951, %v1919, %v1984
      %v2017 = vsel %vm1952, %v1920, %v1985
      %v2018 = vsel %vm1953, %v1921, %v1986
      %v2019 = vsel %vm1954, %v1922, %v1987
      %v2020 = vsel %vm1955, %v1923, %v1988
      %v2021 = vsel %vm1956, %v1924, %v1989
      %v2022 = vsel %vm1957, %v1925, %v1990
      %v2023 = vsel %vm1958, %v1926, %v1991
      %v2024 = vsel %vm1959, %v1927, %v1992
      %v2025 = vsel %vm1960, %v1928, %v1993
      %v2026 = vsel %vm1961, %v1929, %v1994
      %v2027 = vsel %vm1962, %v1930, %v1995
      %v2028 = vsel %vm1963, %v1931, %v1996
      %v2029 = vsel %vm1964, %v1932, %v1997
      %v2030 = vsel %vm1965, %v1933, %v1998
      %v2031 = vsel %vm1966, %v1934, %v1999
      %v2032 = vsel %vm1967, %v1935, %v2000
      %v2033 = vsel %vm1968, %v1936, %v2001
      %v2034 = vsel %vm1969, %v1937, %v2002
      %v2035 = vsel %vm1970, %v1938, %v2003
      %v2036 = vsel %vm1971, %v1939, %v2004
      %v2037 = vsel %vm1972, %v1940, %v2005
      %v2038 = vpack.c.bf16 %v2008, %v2006
      %v2039 = vpack.c.bf16 %v2009, %v2007
      %v2040 = vpack.c.bf16 %v2012, %v2010
      %v2041 = vpack.c.bf16 %v2013, %v2011
      %v2042 = vpack.c.bf16 %v2016, %v2014
      %v2043 = vpack.c.bf16 %v2017, %v2015
      %v2044 = vpack.c.bf16 %v2020, %v2018
      %v2045 = vpack.c.bf16 %v2021, %v2019
      %v2046 = vpack.c.bf16 %v2024, %v2022
      %v2047 = vpack.c.bf16 %v2025, %v2023
      %v2048 = vpack.c.bf16 %v2028, %v2026
      %v2049 = vpack.c.bf16 %v2029, %v2027
      %v2050 = vpack.c.bf16 %v2032, %v2030
      %v2051 = vpack.c.bf16 %v2033, %v2031
      %v2052 = vpack.c.bf16 %v2036, %v2034
      %v2053 = vpack.c.bf16 %v2037, %v2035
      %v2070 = vunpack.c.l.b16 %v2038
      %v2071 = vunpack.c.l.b16 %v2039
      %v2072 = vunpack.c.h.b16 %v2038
      %v2073 = vunpack.c.h.b16 %v2039
      %v2074 = vunpack.c.l.b16 %v2040
      %v2075 = vunpack.c.l.b16 %v2041
      %v2076 = vunpack.c.h.b16 %v2040
      %v2077 = vunpack.c.h.b16 %v2041
      %v2078 = vunpack.c.l.b16 %v2042
      %v2079 = vunpack.c.l.b16 %v2043
      %v2080 = vunpack.c.h.b16 %v2042
      %v2081 = vunpack.c.h.b16 %v2043
      %v2082 = vunpack.c.l.b16 %v2044
      %v2083 = vunpack.c.l.b16 %v2045
      %v2084 = vunpack.c.h.b16 %v2044
      %v2085 = vunpack.c.h.b16 %v2045
      %v2086 = vunpack.c.l.b16 %v2046
      %v2087 = vunpack.c.l.b16 %v2047
      %v2088 = vunpack.c.h.b16 %v2046
      %v2089 = vunpack.c.h.b16 %v2047
      %v2090 = vunpack.c.l.b16 %v2048
      %v2091 = vunpack.c.l.b16 %v2049
      %v2092 = vunpack.c.h.b16 %v2048
      %v2093 = vunpack.c.h.b16 %v2049
      %v2094 = vunpack.c.l.b16 %v2050
      %v2095 = vunpack.c.l.b16 %v2051
      %v2096 = vunpack.c.h.b16 %v2050
      %v2097 = vunpack.c.h.b16 %v2051
      %v2098 = vunpack.c.l.b16 %v2052
      %v2099 = vunpack.c.l.b16 %v2053
      %v2100 = vunpack.c.h.b16 %v2052
      %v2101 = vunpack.c.h.b16 %v2053
      %v2102 = vpack.c.b16 %v2071, %v2070
      %v2103 = vpack.c.b16 %v2073, %v2072
      %v2104 = vpack.c.b16 %v2075, %v2074
      %v2105 = vpack.c.b16 %v2077, %v2076
      %v2106 = vpack.c.b16 %v2079, %v2078
      %v2107 = vpack.c.b16 %v2081, %v2080
      %v2108 = vpack.c.b16 %v2083, %v2082
      %v2109 = vpack.c.b16 %v2085, %v2084
      %v2110 = vpack.c.b16 %v2087, %v2086
      %v2111 = vpack.c.b16 %v2089, %v2088
      %v2112 = vpack.c.b16 %v2091, %v2090
      %v2113 = vpack.c.b16 %v2093, %v2092
      %v2114 = vpack.c.b16 %v2095, %v2094
      %v2115 = vpack.c.b16 %v2097, %v2096
      %v2116 = vpack.c.b16 %v2099, %v2098
      %v2117 = vpack.c.b16 %v2101, %v2100
      %2134 = vst [vmem:[%s241] sm:$0xff] %v2102
      %2135 = vst [vmem:[%s241 + $0x8] sm:$0xff] %v2103
      %2136 = vst [vmem:[%s241 + $0x10] sm:$0xff] %v2104
      %2137 = vst [vmem:[%s241 + $0x18] sm:$0xff] %v2105
      %2138 = vst [vmem:[%s241 + $0x20] sm:$0xff] %v2106
      %2139 = vst [vmem:[%s241 + $0x28] sm:$0xff] %v2107
      %2140 = vst [vmem:[%s241 + $0x30] sm:$0xff] %v2108
      %2141 = vst [vmem:[%s241 + $0x38] sm:$0xff] %v2109
      %2142 = vst [vmem:[%s241 + $0x40] sm:$0xff] %v2110
      %2143 = vst [vmem:[%s241 + $0x48] sm:$0xff] %v2111
      %2144 = vst [vmem:[%s241 + $0x50] sm:$0xff] %v2112
      %2145 = vst [vmem:[%s241 + $0x58] sm:$0xff] %v2113
      %2146 = vst [vmem:[%s241 + $0x60] sm:$0xff] %v2114
      %2147 = vst [vmem:[%s241 + $0x68] sm:$0xff] %v2115
      %2148 = vst [vmem:[%s241 + $0x70] sm:$0xff] %v2116
      %2149 = vst [vmem:[%s241 + $0x78] sm:$0xff] %v2117
      %v2150 = vld [vmem:[#allocation2 + $0x100] sm:$0xff]
      %v2151 = vld [vmem:[#allocation2 + $0x108] sm:$0xff]
      %v2152 = vld [vmem:[#allocation2 + $0x110] sm:$0xff]
      %v2153 = vld [vmem:[#allocation2 + $0x118] sm:$0xff]
      %v2154 = vld [vmem:[#allocation2 + $0x120] sm:$0xff]
      %v2155 = vld [vmem:[#allocation2 + $0x128] sm:$0xff]
      %v2156 = vld [vmem:[#allocation2 + $0x130] sm:$0xff]
      %v2157 = vld [vmem:[#allocation2 + $0x138] sm:$0xff]
      %v2158 = vld [vmem:[#allocation2 + $0x140] sm:$0xff]
      %v2159 = vld [vmem:[#allocation2 + $0x148] sm:$0xff]
      %v2160 = vld [vmem:[#allocation2 + $0x150] sm:$0xff]
      %v2161 = vld [vmem:[#allocation2 + $0x158] sm:$0xff]
      %v2162 = vld [vmem:[#allocation2 + $0x160] sm:$0xff]
      %v2163 = vld [vmem:[#allocation2 + $0x168] sm:$0xff]
      %v2164 = vld [vmem:[#allocation2 + $0x170] sm:$0xff]
      %v2165 = vld [vmem:[#allocation2 + $0x178] sm:$0xff]
      %v2166 = vld [vmem:[#allocation2 + $0x180] sm:$0xff]
      %v2167 = vld [vmem:[#allocation2 + $0x188] sm:$0xff]
      %v2168 = vld [vmem:[#allocation2 + $0x190] sm:$0xff]
      %v2169 = vld [vmem:[#allocation2 + $0x198] sm:$0xff]
      %v2170 = vld [vmem:[#allocation2 + $0x1a0] sm:$0xff]
      %v2171 = vld [vmem:[#allocation2 + $0x1a8] sm:$0xff]
      %v2172 = vld [vmem:[#allocation2 + $0x1b0] sm:$0xff]
      %v2173 = vld [vmem:[#allocation2 + $0x1b8] sm:$0xff]
      %v2174 = vld [vmem:[#allocation2 + $0x1c0] sm:$0xff]
      %v2175 = vld [vmem:[#allocation2 + $0x1c8] sm:$0xff]
      %v2176 = vld [vmem:[#allocation2 + $0x1d0] sm:$0xff]
      %v2177 = vld [vmem:[#allocation2 + $0x1d8] sm:$0xff]
      %v2178 = vld [vmem:[#allocation2 + $0x1e0] sm:$0xff]
      %v2179 = vld [vmem:[#allocation2 + $0x1e8] sm:$0xff]
      %v2180 = vld [vmem:[#allocation2 + $0x1f0] sm:$0xff]
      %v2181 = vld [vmem:[#allocation2 + $0x1f8] sm:$0xff]
      %v2182 = vadd.f32 %v2150, %v1902
      %v2183 = vadd.f32 %v2151, %v1906
      %v2184 = vadd.f32 %v2152, %v1902
      %v2185 = vadd.f32 %v2153, %v1906
      %v2186 = vadd.f32 %v2154, %v1902
      %v2187 = vadd.f32 %v2155, %v1906
      %v2188 = vadd.f32 %v2156, %v1902
      %v2189 = vadd.f32 %v2157, %v1906
      %v2190 = vadd.f32 %v2158, %v1902
      %v2191 = vadd.f32 %v2159, %v1906
      %v2192 = vadd.f32 %v2160, %v1902
      %v2193 = vadd.f32 %v2161, %v1906
      %v2194 = vadd.f32 %v2162, %v1902
      %v2195 = vadd.f32 %v2163, %v1906
      %v2196 = vadd.f32 %v2164, %v1902
      %v2197 = vadd.f32 %v2165, %v1906
      %v2198 = vadd.f32 %v2166, %v1902
      %v2199 = vadd.f32 %v2167, %v1906
      %v2200 = vadd.f32 %v2168, %v1902
      %v2201 = vadd.f32 %v2169, %v1906
      %v2202 = vadd.f32 %v2170, %v1902
      %v2203 = vadd.f32 %v2171, %v1906
      %v2204 = vadd.f32 %v2172, %v1902
      %v2205 = vadd.f32 %v2173, %v1906
      %v2206 = vadd.f32 %v2174, %v1902
      %v2207 = vadd.f32 %v2175, %v1906
      %v2208 = vadd.f32 %v2176, %v1902
      %v2209 = vadd.f32 %v2177, %v1906
      %v2210 = vadd.f32 %v2178, %v1902
      %v2211 = vadd.f32 %v2179, %v1906
      %v2212 = vadd.f32 %v2180, %v1902
      %v2213 = vadd.f32 %v2181, %v1906
      %vm2214 = vcmp.gt.f32.partialorder %v2182, 0.0
      %vm2215 = vcmp.gt.f32.partialorder %v2183, 0.0
      %vm2216 = vcmp.gt.f32.partialorder %v2184, 0.0
      %vm2217 = vcmp.gt.f32.partialorder %v2185, 0.0
      %vm2218 = vcmp.gt.f32.partialorder %v2186, 0.0
      %vm2219 = vcmp.gt.f32.partialorder %v2187, 0.0
      %vm2220 = vcmp.gt.f32.partialorder %v2188, 0.0
      %vm2221 = vcmp.gt.f32.partialorder %v2189, 0.0
      %vm2222 = vcmp.gt.f32.partialorder %v2190, 0.0
      %vm2223 = vcmp.gt.f32.partialorder %v2191, 0.0
      %vm2224 = vcmp.gt.f32.partialorder %v2192, 0.0
      %vm2225 = vcmp.gt.f32.partialorder %v2193, 0.0
      %vm2226 = vcmp.gt.f32.partialorder %v2194, 0.0
      %vm2227 = vcmp.gt.f32.partialorder %v2195, 0.0
      %vm2228 = vcmp.gt.f32.partialorder %v2196, 0.0
      %vm2229 = vcmp.gt.f32.partialorder %v2197, 0.0
      %vm2230 = vcmp.gt.f32.partialorder %v2198, 0.0
      %vm2231 = vcmp.gt.f32.partialorder %v2199, 0.0
      %vm2232 = vcmp.gt.f32.partialorder %v2200, 0.0
      %vm2233 = vcmp.gt.f32.partialorder %v2201, 0.0
      %vm2234 = vcmp.gt.f32.partialorder %v2202, 0.0
      %vm2235 = vcmp.gt.f32.partialorder %v2203, 0.0
      %vm2236 = vcmp.gt.f32.partialorder %v2204, 0.0
      %vm2237 = vcmp.gt.f32.partialorder %v2205, 0.0
      %vm2238 = vcmp.gt.f32.partialorder %v2206, 0.0
      %vm2239 = vcmp.gt.f32.partialorder %v2207, 0.0
      %vm2240 = vcmp.gt.f32.partialorder %v2208, 0.0
      %vm2241 = vcmp.gt.f32.partialorder %v2209, 0.0
      %vm2242 = vcmp.gt.f32.partialorder %v2210, 0.0
      %vm2243 = vcmp.gt.f32.partialorder %v2211, 0.0
      %vm2244 = vcmp.gt.f32.partialorder %v2212, 0.0
      %vm2245 = vcmp.gt.f32.partialorder %v2213, 0.0
      %v2246 = vmul.f32 %v1973, %v2182
      %v2247 = vmul.f32 %v1973, %v2183
      %v2248 = vmul.f32 %v1973, %v2184
      %v2249 = vmul.f32 %v1973, %v2185
      %v2250 = vmul.f32 %v1973, %v2186
      %v2251 = vmul.f32 %v1973, %v2187
      %v2252 = vmul.f32 %v1973, %v2188
      %v2253 = vmul.f32 %v1973, %v2189
      %v2254 = vmul.f32 %v1973, %v2190
      %v2255 = vmul.f32 %v1973, %v2191
      %v2256 = vmul.f32 %v1973, %v2192
      %v2257 = vmul.f32 %v1973, %v2193
      %v2258 = vmul.f32 %v1973, %v2194
      %v2259 = vmul.f32 %v1973, %v2195
      %v2260 = vmul.f32 %v1973, %v2196
      %v2261 = vmul.f32 %v1973, %v2197
      %v2262 = vmul.f32 %v1973, %v2198
      %v2263 = vmul.f32 %v1973, %v2199
      %v2264 = vmul.f32 %v1973, %v2200
      %v2265 = vmul.f32 %v1973, %v2201
      %v2266 = vmul.f32 %v1973, %v2202
      %v2267 = vmul.f32 %v1973, %v2203
      %v2268 = vmul.f32 %v1973, %v2204
      %v2269 = vmul.f32 %v1973, %v2205
      %v2270 = vmul.f32 %v1973, %v2206
      %v2271 = vmul.f32 %v1973, %v2207
      %v2272 = vmul.f32 %v1973, %v2208
      %v2273 = vmul.f32 %v1973, %v2209
      %v2274 = vmul.f32 %v1973, %v2210
      %v2275 = vmul.f32 %v1973, %v2211
      %v2276 = vmul.f32 %v1973, %v2212
      %v2277 = vmul.f32 %v1973, %v2213
      %v2278 = vsel %vm2214, %v2182, %v2246
      %v2279 = vsel %vm2215, %v2183, %v2247
      %v2280 = vsel %vm2216, %v2184, %v2248
      %v2281 = vsel %vm2217, %v2185, %v2249
      %v2282 = vsel %vm2218, %v2186, %v2250
      %v2283 = vsel %vm2219, %v2187, %v2251
      %v2284 = vsel %vm2220, %v2188, %v2252
      %v2285 = vsel %vm2221, %v2189, %v2253
      %v2286 = vsel %vm2222, %v2190, %v2254
      %v2287 = vsel %vm2223, %v2191, %v2255
      %v2288 = vsel %vm2224, %v2192, %v2256
      %v2289 = vsel %vm2225, %v2193, %v2257
      %v2290 = vsel %vm2226, %v2194, %v2258
      %v2291 = vsel %vm2227, %v2195, %v2259
      %v2292 = vsel %vm2228, %v2196, %v2260
      %v2293 = vsel %vm2229, %v2197, %v2261
      %v2294 = vsel %vm2230, %v2198, %v2262
      %v2295 = vsel %vm2231, %v2199, %v2263
      %v2296 = vsel %vm2232, %v2200, %v2264
      %v2297 = vsel %vm2233, %v2201, %v2265
      %v2298 = vsel %vm2234, %v2202, %v2266
      %v2299 = vsel %vm2235, %v2203, %v2267
      %v2300 = vsel %vm2236, %v2204, %v2268
      %v2301 = vsel %vm2237, %v2205, %v2269
      %v2302 = vsel %vm2238, %v2206, %v2270
      %v2303 = vsel %vm2239, %v2207, %v2271
      %v2304 = vsel %vm2240, %v2208, %v2272
      %v2305 = vsel %vm2241, %v2209, %v2273
      %v2306 = vsel %vm2242, %v2210, %v2274
      %v2307 = vsel %vm2243, %v2211, %v2275
      %v2308 = vsel %vm2244, %v2212, %v2276
      %v2309 = vsel %vm2245, %v2213, %v2277
      %v2310 = vpack.c.bf16 %v2280, %v2278
      %v2311 = vpack.c.bf16 %v2281, %v2279
      %v2312 = vpack.c.bf16 %v2284, %v2282
      %v2313 = vpack.c.bf16 %v2285, %v2283
      %v2314 = vpack.c.bf16 %v2288, %v2286
      %v2315 = vpack.c.bf16 %v2289, %v2287
      %v2316 = vpack.c.bf16 %v2292, %v2290
      %v2317 = vpack.c.bf16 %v2293, %v2291
      %v2318 = vpack.c.bf16 %v2296, %v2294
      %v2319 = vpack.c.bf16 %v2297, %v2295
      %v2320 = vpack.c.bf16 %v2300, %v2298
      %v2321 = vpack.c.bf16 %v2301, %v2299
      %v2322 = vpack.c.bf16 %v2304, %v2302
      %v2323 = vpack.c.bf16 %v2305, %v2303
      %v2324 = vpack.c.bf16 %v2308, %v2306
      %v2325 = vpack.c.bf16 %v2309, %v2307
      %v2342 = vunpack.c.l.b16 %v2310
      %v2343 = vunpack.c.l.b16 %v2311
      %v2344 = vunpack.c.h.b16 %v2310
      %v2345 = vunpack.c.h.b16 %v2311
      %v2346 = vunpack.c.l.b16 %v2312
      %v2347 = vunpack.c.l.b16 %v2313
      %v2348 = vunpack.c.h.b16 %v2312
      %v2349 = vunpack.c.h.b16 %v2313
      %v2350 = vunpack.c.l.b16 %v2314
      %v2351 = vunpack.c.l.b16 %v2315
      %v2352 = vunpack.c.h.b16 %v2314
      %v2353 = vunpack.c.h.b16 %v2315
      %v2354 = vunpack.c.l.b16 %v2316
      %v2355 = vunpack.c.l.b16 %v2317
      %v2356 = vunpack.c.h.b16 %v2316
      %v2357 = vunpack.c.h.b16 %v2317
      %v2358 = vunpack.c.l.b16 %v2318
      %v2359 = vunpack.c.l.b16 %v2319
      %v2360 = vunpack.c.h.b16 %v2318
      %v2361 = vunpack.c.h.b16 %v2319
      %v2362 = vunpack.c.l.b16 %v2320
      %v2363 = vunpack.c.l.b16 %v2321
      %v2364 = vunpack.c.h.b16 %v2320
      %v2365 = vunpack.c.h.b16 %v2321
      %v2366 = vunpack.c.l.b16 %v2322
      %v2367 = vunpack.c.l.b16 %v2323
      %v2368 = vunpack.c.h.b16 %v2322
      %v2369 = vunpack.c.h.b16 %v2323
      %v2370 = vunpack.c.l.b16 %v2324
      %v2371 = vunpack.c.l.b16 %v2325
      %v2372 = vunpack.c.h.b16 %v2324
      %v2373 = vunpack.c.h.b16 %v2325
      %v2374 = vpack.c.b16 %v2343, %v2342
      %v2375 = vpack.c.b16 %v2345, %v2344
      %v2376 = vpack.c.b16 %v2347, %v2346
      %v2377 = vpack.c.b16 %v2349, %v2348
      %v2378 = vpack.c.b16 %v2351, %v2350
      %v2379 = vpack.c.b16 %v2353, %v2352
      %v2380 = vpack.c.b16 %v2355, %v2354
      %v2381 = vpack.c.b16 %v2357, %v2356
      %v2382 = vpack.c.b16 %v2359, %v2358
      %v2383 = vpack.c.b16 %v2361, %v2360
      %v2384 = vpack.c.b16 %v2363, %v2362
      %v2385 = vpack.c.b16 %v2365, %v2364
      %v2386 = vpack.c.b16 %v2367, %v2366
      %v2387 = vpack.c.b16 %v2369, %v2368
      %v2388 = vpack.c.b16 %v2371, %v2370
      %v2389 = vpack.c.b16 %v2373, %v2372
      %2406 = vst [vmem:[%s241 + $0x80] sm:$0xff] %v2374
      %2407 = vst [vmem:[%s241 + $0x88] sm:$0xff] %v2375
      %2408 = vst [vmem:[%s241 + $0x90] sm:$0xff] %v2376
      %2409 = vst [vmem:[%s241 + $0x98] sm:$0xff] %v2377
      %2410 = vst [vmem:[%s241 + $0xa0] sm:$0xff] %v2378
      %2411 = vst [vmem:[%s241 + $0xa8] sm:$0xff] %v2379
      %2412 = vst [vmem:[%s241 + $0xb0] sm:$0xff] %v2380
      %2413 = vst [vmem:[%s241 + $0xb8] sm:$0xff] %v2381
      %2414 = vst [vmem:[%s241 + $0xc0] sm:$0xff] %v2382
      %2415 = vst [vmem:[%s241 + $0xc8] sm:$0xff] %v2383
      %2416 = vst [vmem:[%s241 + $0xd0] sm:$0xff] %v2384
      %2417 = vst [vmem:[%s241 + $0xd8] sm:$0xff] %v2385
      %2418 = vst [vmem:[%s241 + $0xe0] sm:$0xff] %v2386
      %2419 = vst [vmem:[%s241 + $0xe8] sm:$0xff] %v2387
      %2420 = vst [vmem:[%s241 + $0xf0] sm:$0xff] %v2388
      %2421 = vst [vmem:[%s241 + $0xf8] sm:$0xff] %v2389
      %s2422 = smul.u32 32, %s21
      %p2423 = scmp.lt.s32.totalorder %s20, 1
      %s2424 = scalar_select %p2423, %s20, 1
      %p2425 = scmp.lt.s32.totalorder %s2422, 31
      %s2426 = scalar_select %p2425, %s2422, 31
      %s2427 = smul.addr %s2426, 2
      %s2428 = smul.addr %s2424, 64
      %s2429 = sadd.s32 %s2427, %s2428
      %s2430 = smul.addr %s2429, 4
      %s2431 = scalar_lea.vmem %s4, %s2430
      // Predicated region
      $region37: #{upsample_pallas.1} parent=35 // pred_check
        %p2432 = pneg %p139
      $region38: #{upsample_pallas.1} parent=35 // pred_check_branch
        %2434 = sbr.rel (%p2432) target = $region40
      $region39: #{upsample_pallas.1} parent=35 // pred_region
        %s2435 = smul.u32 32, %s21
      $region40: #{upsample_pallas.1} parent=35 // pred_fallthru
        _
    $region36: #{upsample_pallas.1} parent=5 // pred_fallthru
      _
    %p2436 = scmp.le.s32.totalorder 2, %s11
    // Predicated region
    $region41: #{upsample_pallas.1} parent=5 // pred_check
      %p2437 = pneg %p2436
    $region42: #{upsample_pallas.1} parent=5 // pred_check_branch
      %2439 = sbr.rel (%p2437) target = $region44
    $region43: #{upsample_pallas.1} parent=5 // pred_region
      %s2440 = ssub.s32 %s11, 2
      // Predicated region
      $region45: #{upsample_pallas.1} parent=43 // pred_check
        %p2441 = pneg %p145
      $region46: #{upsample_pallas.1} parent=43 // pred_check_branch
        %2443 = sbr.rel (%p2441) target = $region48
      $region47: #{upsample_pallas.1} parent=43 // pred_region
        %s2444 = smul.u32 32, %s23
        %p2445 = scmp.lt.s32.totalorder %s22, 1
        %s2446 = scalar_select %p2445, %s22, 1
        %p2447 = scmp.lt.s32.totalorder %s2444, 31
        %s2448 = scalar_select %p2447, %s2444, 31
        %s2449 = smul.addr %s2448, 2
        %s2450 = smul.addr %s2446, 64
        %s2451 = sadd.s32 %s2449, %s2450
        %s2452 = smul.addr %s2451, 4
        %s2453 = scalar_lea.vmem %s4, %s2452
      $region48: #{upsample_pallas.1} parent=43 // pred_fallthru
        _
    $region44: #{upsample_pallas.1} parent=5 // pred_fallthru
      _
  $region6: #{upsample_pallas.1} parent=0 // loop_footer
    %s15 = sadd.s32 1, %s11
  $region7: #{upsample_pallas.1} parent=0 // loop_footer_branch
    %10 = sbr.rel target = $region3
  $region8: #{upsample_pallas.1} parent=0 // loop_exit
    _

</llo_original>
